<compile_context>
chip_gen: v5e
topology: v5e:2x2
jax: 0.10.0
libtpu: 0.0.40
codegen_flags: <defaults>
</compile_context>

<pallas_src>
import functools

import jax
import jax.numpy as jnp
from jax.experimental import pallas as pl
from jax.experimental.pallas import tpu as pltpu


def residual_block_kernel(colpos_ref, x_ref, w1_ref, w2_ref, o_ref,
                          pad_ref, hbuf_ref, col_ref, *, C, H, W, eps):
    Wp = W + 2                       # padded row width (lane frame of one row)
    NCOL = H * Wp                    # lane frame for conv outputs
    PLEN = (H + 2) * Wp + 2          # padded-flat image length (+2 tap overrun)
    inv_hw = 1.0 / float(H * W)

    colpos = colpos_ref[...]                 # (1, NCOL) int32: lane % Wp
    valid = colpos < W                       # real pixels (cols W, W+1 are junk)
    is_left = colpos == 0
    is_right = colpos == (W + 1)

    def conv3x3(load_tap, w2d):
        # im2col: 9 contiguous lane-shifted slices of the padded-flat image.
        for dy in range(3):
            for dx in range(3):
                k = dy * 3 + dx
                col_ref[k * C:(k + 1) * C, :] = load_tap(dy * Wp + dx)
        # one fused MXU matmul: (C_out, 9*C_in) @ (9*C_in, NCOL)
        return jnp.dot(w2d, col_ref[...],
                       preferred_element_type=jnp.float32,
                       precision=jax.lax.Precision.HIGHEST)

    def inorm(y):
        # single-pass masked stats over the H*W valid positions (biased var)
        ym = jnp.where(valid, y, 0.0)
        s = jnp.sum(ym, axis=-1, keepdims=True)
        s2 = jnp.sum(ym * ym, axis=-1, keepdims=True)
        mu = s * inv_hw
        var = s2 * inv_hw - mu * mu
        return (y - mu) * jax.lax.rsqrt(var + eps)

    xp = x_ref[0].astype(jnp.float32)        # (C, PLEN) reflect-padded input

    # ---- conv1 -> InstanceNorm -> ReLU (conv bias cancelled by IN) ----
    h = conv3x3(lambda off: xp[:, off:off + NCOL], w1_ref[...])
    h = jnp.maximum(inorm(h), 0.0)

    # ---- rebuild the reflect-padded flat image of h for conv2 ----
    # Column reflect: stage h in hbuf, read it back at lane shifts +1 / -1 / -3
    # and select per column class (left pad / interior / right pad).
    hbuf_ref[:, 0:4] = jnp.zeros((C, 4), jnp.float32)
    hbuf_ref[:, 4 + NCOL:] = jnp.zeros((C, 4), jnp.float32)
    hbuf_ref[:, 4:4 + NCOL] = h
    left = hbuf_ref[:, 5:5 + NCOL]      # h[q+1]  -> value for left pad column
    ctr = hbuf_ref[:, 3:3 + NCOL]       # h[q-1]  -> interior, shifted right by 1
    right = hbuf_ref[:, 1:1 + NCOL]     # h[q-3]  -> value for right pad column
    mid = jnp.where(is_left, left, jnp.where(is_right, right, ctr))
    # Row reflect: top pad row = row 1 of mid, bottom pad row = row H-2 of mid.
    pad_ref[:, 0:Wp] = mid[:, Wp:2 * Wp]
    pad_ref[:, Wp:Wp + NCOL] = mid
    pad_ref[:, Wp + NCOL:Wp + NCOL + Wp] = mid[:, (H - 2) * Wp:(H - 1) * Wp]
    pad_ref[:, (H + 2) * Wp:PLEN] = jnp.zeros((C, 2), jnp.float32)

    # ---- conv2 -> InstanceNorm (conv bias cancelled) ----
    h2 = conv3x3(lambda off: pad_ref[:, off:off + NCOL], w2_ref[...])
    h2 = inorm(h2)

    # ---- residual add; output stays in the lane-dense (H, Wp) frame ----
    o_ref[0] = (xp[:, Wp + 1:Wp + 1 + NCOL] + h2).astype(o_ref.dtype)


def residual_block(x, w1, b1, w2, b2, *, eps=1e-5):
    # x: (N, C, H, W); w*: (C, C, 3, 3); b*: (C,)
    N, C, H, W = x.shape
    Wp, Hp = W + 2, H + 2
    NCOL = H * Wp
    PLEN = Hp * Wp + 2

    # Conv biases are exactly cancelled by the affine-free InstanceNorm that
    # immediately follows each conv, so they are accepted but unused.
    del b1, b2

    # im2col-ordered weights: (C_out, 9*C_in), tap-major (dy, dx), then c_in.
    def reorder(w):
        return jnp.transpose(w, (0, 2, 3, 1)).reshape(C, 9 * C)

    w1_2d = reorder(w1)
    w2_2d = reorder(w2)

    # Reflect-pad the input once (layout plumbing); flatten row-major and add
    # 2 zero lanes so the bottom-right tap slice stays in bounds.
    xpad = jnp.pad(x, ((0, 0), (0, 0), (1, 1), (1, 1)), mode="reflect")
    xpad_flat = xpad.reshape(N, C, Hp * Wp)
    xpad_flat = jnp.pad(xpad_flat, ((0, 0), (0, 0), (0, PLEN - Hp * Wp)))

    # column-within-row index for every lane of the NCOL frame
    colpos = (jnp.arange(NCOL, dtype=jnp.int32) % Wp).reshape(1, NCOL)

    kernel = functools.partial(residual_block_kernel, C=C, H=H, W=W, eps=eps)

    vmem_need = 4 * (2 * C * PLEN + 2 * NCOL + 4 * 9 * C * C + 2 * C * NCOL
                     + C * PLEN + C * (NCOL + 8) + 9 * C * NCOL)
    vmem_limit = int(min(max(2 * vmem_need, 16 * 1024 * 1024),
                         48 * 1024 * 1024))

    out_flat = pl.pallas_call(
        kernel,
        out_shape=jax.ShapeDtypeStruct((N, C, NCOL), x.dtype),
        grid_spec=pltpu.PrefetchScalarGridSpec(
            num_scalar_prefetch=0,
            grid=(N,),
            in_specs=[
                pl.BlockSpec((1, NCOL), lambda n: (0, 0)),        # colpos
                pl.BlockSpec((1, C, PLEN), lambda n: (n, 0, 0)),  # padded x
                pl.BlockSpec((C, 9 * C), lambda n: (0, 0)),       # w1
                pl.BlockSpec((C, 9 * C), lambda n: (0, 0)),       # w2
            ],
            out_specs=pl.BlockSpec((1, C, NCOL), lambda n: (n, 0, 0)),
            scratch_shapes=[
                pltpu.VMEM((C, PLEN), jnp.float32),       # padded image of h
                pltpu.VMEM((C, NCOL + 8), jnp.float32),   # staging for shifts
                pltpu.VMEM((9 * C, NCOL), jnp.float32),   # im2col slab
            ],
        ),
        compiler_params=pltpu.CompilerParams(
            dimension_semantics=("parallel",),
            vmem_limit_bytes=vmem_limit,
        ),
    )(colpos, xpad_flat, w1_2d, w2_2d)

    # drop the 2 junk columns per row
    return out_flat.reshape(N, C, H, Wp)[:, :, :, :W]


def _reference(x, w1, b1, w2, b2, eps=1e-5):
    def conv(h, w, b):
        hp = jnp.pad(h, ((0, 0), (0, 0), (1, 1), (1, 1)), mode="reflect")
        y = jax.lax.conv_general_dilated(
            hp, w, window_strides=(1, 1), padding="VALID",
            dimension_numbers=("NCHW", "OIHW", "NCHW"),
            precision=jax.lax.Precision.HIGHEST)
        return y + b[None, :, None, None]

    def inorm(y):
        mu = y.mean(axis=(2, 3), keepdims=True)
        var = ((y - mu) ** 2).mean(axis=(2, 3), keepdims=True)
        return (y - mu) / jnp.sqrt(var + eps)

    h = jax.nn.relu(inorm(conv(x, w1, b1)))
    h = inorm(conv(h, w2, b2))
    return x + h


if __name__ == "__main__":
    N, C, H, W = 2, 4, 16, 16
    key = jax.random.PRNGKey(0)
    kx, kw1, kb1, kw2, kb2 = jax.random.split(key, 5)

    x = jax.random.normal(kx, (N, C, H, W), dtype=jnp.float32)
    # Deterministic parameter init (roughly Kaiming-uniform, like nn.Conv2d)
    fan_in = C * 3 * 3
    bound = 1.0 / jnp.sqrt(fan_in)
    w1 = jax.random.uniform(kw1, (C, C, 3, 3), jnp.float32, -bound, bound)
    b1 = jax.random.uniform(kb1, (C,), jnp.float32, -bound, bound)
    w2 = jax.random.uniform(kw2, (C, C, 3, 3), jnp.float32, -bound, bound)
    b2 = jax.random.uniform(kb2, (C,), jnp.float32, -bound, bound)

    out = residual_block(x, w1, b1, w2, b2)
    out = jax.block_until_ready(out)

    ref = jax.block_until_ready(_reference(x, w1, b1, w2, b2))
    assert out.shape == (N, C, H, W)
    assert jnp.allclose(out, ref, atol=1e-3, rtol=1e-3), (
        float(jnp.max(jnp.abs(out - ref))))

    print("KERNEL_OK")
</pallas_src>

<mosaic_0001>
module attributes {stable_mosaic.version = 11 : i64} {
  func.func @residual_block_kernel(%arg0: i32, %arg1: memref<1x288xi32, #tpu.memory_space<vmem>>, %arg2: memref<1x4x326xf32, #tpu.memory_space<vmem>>, %arg3: memref<4x36xf32, #tpu.memory_space<vmem>>, %arg4: memref<4x36xf32, #tpu.memory_space<vmem>>, %arg5: memref<1x4x288xf32, #tpu.memory_space<vmem>>, %arg6: memref<4x326xf32, #tpu.memory_space<vmem>>, %arg7: memref<4x296xf32, #tpu.memory_space<vmem>>, %arg8: memref<36x288xf32, #tpu.memory_space<vmem>>) attributes {dimension_semantics = [#tpu.dimension_semantics<parallel>], iteration_bounds = array<i64: 2>, scalar_prefetch = 0 : i64, scratch_operands = 3 : i64, tpu.core_type = #tpu.core_type<tc>, window_params = [{pipeline_mode = #tpu.pipeline_mode<synchronous>, transform_indices = @transform_0, window_bounds = array<i64: 1, 288>}, {transform_indices = @transform_1, window_bounds = array<i64: 1, 4, 326>}, {pipeline_mode = #tpu.pipeline_mode<synchronous>, transform_indices = @transform_2, window_bounds = array<i64: 4, 36>}, {pipeline_mode = #tpu.pipeline_mode<synchronous>, transform_indices = @transform_3, window_bounds = array<i64: 4, 36>}, {transform_indices = @transform_4, window_bounds = array<i64: 1, 4, 288>}]} {
    %c0 = arith.constant 0 : index
    %c0_0 = arith.constant 0 : index
    %0 = vector.load %arg1[%c0, %c0_0] : memref<1x288xi32, #tpu.memory_space<vmem>>, vector<1x288xi32>
    %c16_i32 = arith.constant 16 : i32
    %1 = vector.broadcast %c16_i32 : i32 to vector<1x288xi32>
    %2 = arith.cmpi slt, %0, %1 : vector<1x288xi32>
    %c0_i32 = arith.constant 0 : i32
    %3 = vector.broadcast %c0_i32 : i32 to vector<1x288xi32>
    %4 = arith.cmpi eq, %0, %3 : vector<1x288xi32>
    %c17_i32 = arith.constant 17 : i32
    %5 = vector.broadcast %c17_i32 : i32 to vector<1x288xi32>
    %6 = arith.cmpi eq, %0, %5 : vector<1x288xi32>
    %c0_1 = arith.constant 0 : index
    %c0_2 = arith.constant 0 : index
    %c0_3 = arith.constant 0 : index
    %7 = vector.load %arg2[%c0_1, %c0_2, %c0_3] : memref<1x4x326xf32, #tpu.memory_space<vmem>>, vector<1x4x326xf32>
    %8 = vector.shape_cast %7 : vector<1x4x326xf32> to vector<4x326xf32>
    %c0_4 = arith.constant 0 : index
    %c0_5 = arith.constant 0 : index
    %9 = vector.load %arg3[%c0_4, %c0_5] : memref<4x36xf32, #tpu.memory_space<vmem>>, vector<4x36xf32>
    %10 = vector.extract_strided_slice %8 {offsets = [0, 0], sizes = [4, 288], strides = [1, 1]} : vector<4x326xf32> to vector<4x288xf32>
    %c0_6 = arith.constant 0 : index
    %c0_7 = arith.constant 0 : index
    %11 = vector.load %arg8[%c0_6, %c0_7] : memref<36x288xf32, #tpu.memory_space<vmem>>, vector<4x288xf32>
    tpu.vector_store %arg8[%c0_6, %c0_7], %10 {strides = array<i32>} : memref<36x288xf32, #tpu.memory_space<vmem>>, vector<4x288xf32>,
    %12 = vector.extract_strided_slice %8 {offsets = [0, 1], sizes = [4, 288], strides = [1, 1]} : vector<4x326xf32> to vector<4x288xf32>
    %c4 = arith.constant 4 : index
    %c0_8 = arith.constant 0 : index
    %13 = vector.load %arg8[%c4, %c0_8] : memref<36x288xf32, #tpu.memory_space<vmem>>, vector<4x288xf32>
    tpu.vector_store %arg8[%c4, %c0_8], %12 {strides = array<i32>} : memref<36x288xf32, #tpu.memory_space<vmem>>, vector<4x288xf32>,
    %14 = vector.extract_strided_slice %8 {offsets = [0, 2], sizes = [4, 288], strides = [1, 1]} : vector<4x326xf32> to vector<4x288xf32>
    %c8 = arith.constant 8 : index
    %c0_9 = arith.constant 0 : index
    %15 = vector.load %arg8[%c8, %c0_9] : memref<36x288xf32, #tpu.memory_space<vmem>>, vector<4x288xf32>
    tpu.vector_store %arg8[%c8, %c0_9], %14 {strides = array<i32>} : memref<36x288xf32, #tpu.memory_space<vmem>>, vector<4x288xf32>,
    %16 = vector.extract_strided_slice %8 {offsets = [0, 18], sizes = [4, 288], strides = [1, 1]} : vector<4x326xf32> to vector<4x288xf32>
    %c12 = arith.constant 12 : index
    %c0_10 = arith.constant 0 : index
    %17 = vector.load %arg8[%c12, %c0_10] : memref<36x288xf32, #tpu.memory_space<vmem>>, vector<4x288xf32>
    tpu.vector_store %arg8[%c12, %c0_10], %16 {strides = array<i32>} : memref<36x288xf32, #tpu.memory_space<vmem>>, vector<4x288xf32>,
    %18 = vector.extract_strided_slice %8 {offsets = [0, 19], sizes = [4, 288], strides = [1, 1]} : vector<4x326xf32> to vector<4x288xf32>
    %c16 = arith.constant 16 : index
    %c0_11 = arith.constant 0 : index
    %19 = vector.load %arg8[%c16, %c0_11] : memref<36x288xf32, #tpu.memory_space<vmem>>, vector<4x288xf32>
    tpu.vector_store %arg8[%c16, %c0_11], %18 {strides = array<i32>} : memref<36x288xf32, #tpu.memory_space<vmem>>, vector<4x288xf32>,
    %20 = vector.extract_strided_slice %8 {offsets = [0, 20], sizes = [4, 288], strides = [1, 1]} : vector<4x326xf32> to vector<4x288xf32>
    %c20 = arith.constant 20 : index
    %c0_12 = arith.constant 0 : index
    %21 = vector.load %arg8[%c20, %c0_12] : memref<36x288xf32, #tpu.memory_space<vmem>>, vector<4x288xf32>
    tpu.vector_store %arg8[%c20, %c0_12], %20 {strides = array<i32>} : memref<36x288xf32, #tpu.memory_space<vmem>>, vector<4x288xf32>,
    %22 = vector.extract_strided_slice %8 {offsets = [0, 36], sizes = [4, 288], strides = [1, 1]} : vector<4x326xf32> to vector<4x288xf32>
    %c24 = arith.constant 24 : index
    %c0_13 = arith.constant 0 : index
    %23 = vector.load %arg8[%c24, %c0_13] : memref<36x288xf32, #tpu.memory_space<vmem>>, vector<4x288xf32>
    tpu.vector_store %arg8[%c24, %c0_13], %22 {strides = array<i32>} : memref<36x288xf32, #tpu.memory_space<vmem>>, vector<4x288xf32>,
    %24 = vector.extract_strided_slice %8 {offsets = [0, 37], sizes = [4, 288], strides = [1, 1]} : vector<4x326xf32> to vector<4x288xf32>
    %c28 = arith.constant 28 : index
    %c0_14 = arith.constant 0 : index
    %25 = vector.load %arg8[%c28, %c0_14] : memref<36x288xf32, #tpu.memory_space<vmem>>, vector<4x288xf32>
    tpu.vector_store %arg8[%c28, %c0_14], %24 {strides = array<i32>} : memref<36x288xf32, #tpu.memory_space<vmem>>, vector<4x288xf32>,
    %26 = vector.extract_strided_slice %8 {offsets = [0, 38], sizes = [4, 288], strides = [1, 1]} : vector<4x326xf32> to vector<4x288xf32>
    %c32 = arith.constant 32 : index
    %c0_15 = arith.constant 0 : index
    %27 = vector.load %arg8[%c32, %c0_15] : memref<36x288xf32, #tpu.memory_space<vmem>>, vector<4x288xf32>
    tpu.vector_store %arg8[%c32, %c0_15], %26 {strides = array<i32>} : memref<36x288xf32, #tpu.memory_space<vmem>>, vector<4x288xf32>,
    %c0_16 = arith.constant 0 : index
    %c0_17 = arith.constant 0 : index
    %28 = vector.load %arg8[%c0_16, %c0_17] : memref<36x288xf32, #tpu.memory_space<vmem>>, vector<36x288xf32>
    %cst = arith.constant dense<0.000000e+00> : vector<4x288xf32>
    %29 = tpu.matmul %9, %28, %cst {dimension_numbers = #tpu.dot_dimension_numbers<[1], [0], [0], [1], [0, 0, 1, 1], [], []>, precision = #tpu.contract_precision<fp32>} : vector<4x36xf32>, vector<36x288xf32>, vector<4x288xf32> -> vector<4x288xf32>
    %cst_18 = arith.constant 0.000000e+00 : f32
    %30 = vector.shape_cast %2 : vector<1x288xi1> to vector<1x288xi1>
    %31 = vector.broadcast %30 : vector<1x288xi1> to vector<4x288xi1>
    %32 = vector.broadcast %cst_18 : f32 to vector<4x288xf32>
    %33 = arith.select %31, %29, %32 : vector<4x288xi1>, vector<4x288xf32>
    %cst_19 = arith.constant dense<0.000000e+00> : vector<4xf32>
    %34 = vector.multi_reduction <add>, %33, %cst_19 [1] : vector<4x288xf32> to vector<4xf32>
    %35 = vector.shape_cast %34 : vector<4xf32> to vector<4x1xf32>
    %36 = arith.mulf %33, %33 : vector<4x288xf32>
    %cst_20 = arith.constant dense<0.000000e+00> : vector<4xf32>
    %37 = vector.multi_reduction <add>, %36, %cst_20 [1] : vector<4x288xf32> to vector<4xf32>
    %38 = vector.shape_cast %37 : vector<4xf32> to vector<4x1xf32>
    %cst_21 = arith.constant 3.906250e-03 : f32
    %39 = vector.broadcast %cst_21 : f32 to vector<4x1xf32>
    %40 = arith.mulf %35, %39 : vector<4x1xf32>
    %cst_22 = arith.constant 3.906250e-03 : f32
    %41 = vector.broadcast %cst_22 : f32 to vector<4x1xf32>
    %42 = arith.mulf %38, %41 : vector<4x1xf32>
    %43 = arith.mulf %40, %40 : vector<4x1xf32>
    %44 = arith.subf %42, %43 : vector<4x1xf32>
    %45 = vector.broadcast %40 : vector<4x1xf32> to vector<4x288xf32>
    %46 = arith.subf %29, %45 : vector<4x288xf32>
    %cst_23 = arith.constant 9.99999974E-6 : f32
    %47 = vector.broadcast %cst_23 : f32 to vector<4x1xf32>
    %48 = arith.addf %44, %47 : vector<4x1xf32>
    %49 = math.rsqrt %48 : vector<4x1xf32>
    %50 = vector.broadcast %49 : vector<4x1xf32> to vector<4x288xf32>
    %51 = arith.mulf %46, %50 : vector<4x288xf32>
    %cst_24 = arith.constant 0.000000e+00 : f32
    %52 = vector.broadcast %cst_24 : f32 to vector<4x288xf32>
    %53 = arith.maximumf %51, %52 : vector<4x288xf32>
    %cst_25 = arith.constant 0.000000e+00 : f32
    %54 = vector.broadcast %cst_25 : f32 to vector<4x4xf32>
    %c0_26 = arith.constant 0 : index
    %c0_27 = arith.constant 0 : index
    %55 = vector.load %arg7[%c0_26, %c0_27] : memref<4x296xf32, #tpu.memory_space<vmem>>, vector<4x4xf32>
    tpu.vector_store %arg7[%c0_26, %c0_27], %54 {strides = array<i32>} : memref<4x296xf32, #tpu.memory_space<vmem>>, vector<4x4xf32>,
    %cst_28 = arith.constant 0.000000e+00 : f32
    %56 = vector.broadcast %cst_28 : f32 to vector<4x4xf32>
    %c0_29 = arith.constant 0 : index
    %c292 = arith.constant 292 : index
    %57 = vector.load %arg7[%c0_29, %c292] : memref<4x296xf32, #tpu.memory_space<vmem>>, vector<4x4xf32>
    tpu.vector_store %arg7[%c0_29, %c292], %56 {strides = array<i32>} : memref<4x296xf32, #tpu.memory_space<vmem>>, vector<4x4xf32>,
    %c0_30 = arith.constant 0 : index
    %c4_31 = arith.constant 4 : index
    %58 = vector.load %arg7[%c0_30, %c4_31] : memref<4x296xf32, #tpu.memory_space<vmem>>, vector<4x288xf32>
    tpu.vector_store %arg7[%c0_30, %c4_31], %53 {strides = array<i32>} : memref<4x296xf32, #tpu.memory_space<vmem>>, vector<4x288xf32>,
    %c0_32 = arith.constant 0 : index
    %c5 = arith.constant 5 : index
    %59 = vector.load %arg7[%c0_32, %c5] : memref<4x296xf32, #tpu.memory_space<vmem>>, vector<4x288xf32>
    %c0_33 = arith.constant 0 : index
    %c3 = arith.constant 3 : index
    %60 = vector.load %arg7[%c0_33, %c3] : memref<4x296xf32, #tpu.memory_space<vmem>>, vector<4x288xf32>
    %c0_34 = arith.constant 0 : index
    %c1 = arith.constant 1 : index
    %61 = vector.load %arg7[%c0_34, %c1] : memref<4x296xf32, #tpu.memory_space<vmem>>, vector<4x288xf32>
    %62 = vector.shape_cast %6 : vector<1x288xi1> to vector<1x288xi1>
    %63 = vector.broadcast %62 : vector<1x288xi1> to vector<4x288xi1>
    %64 = arith.select %63, %61, %60 : vector<4x288xi1>, vector<4x288xf32>
    %65 = vector.shape_cast %4 : vector<1x288xi1> to vector<1x288xi1>
    %66 = vector.broadcast %65 : vector<1x288xi1> to vector<4x288xi1>
    %67 = arith.select %66, %59, %64 : vector<4x288xi1>, vector<4x288xf32>
    %68 = vector.extract_strided_slice %67 {offsets = [0, 18], sizes = [4, 18], strides = [1, 1]} : vector<4x288xf32> to vector<4x18xf32>
    %c0_35 = arith.constant 0 : index
    %c0_36 = arith.constant 0 : index
    %69 = vector.load %arg6[%c0_35, %c0_36] : memref<4x326xf32, #tpu.memory_space<vmem>>, vector<4x18xf32>
    tpu.vector_store %arg6[%c0_35, %c0_36], %68 {strides = array<i32>} : memref<4x326xf32, #tpu.memory_space<vmem>>, vector<4x18xf32>,
    %c0_37 = arith.constant 0 : index
    %c18 = arith.constant 18 : index
    %70 = vector.load %arg6[%c0_37, %c18] : memref<4x326xf32, #tpu.memory_space<vmem>>, vector<4x288xf32>
    tpu.vector_store %arg6[%c0_37, %c18], %67 {strides = array<i32>} : memref<4x326xf32, #tpu.memory_space<vmem>>, vector<4x288xf32>,
    %71 = vector.extract_strided_slice %67 {offsets = [0, 252], sizes = [4, 18], strides = [1, 1]} : vector<4x288xf32> to vector<4x18xf32>
    %c0_38 = arith.constant 0 : index
    %c306 = arith.constant 306 : index
    %72 = vector.load %arg6[%c0_38, %c306] : memref<4x326xf32, #tpu.memory_space<vmem>>, vector<4x18xf32>
    tpu.vector_store %arg6[%c0_38, %c306], %71 {strides = array<i32>} : memref<4x326xf32, #tpu.memory_space<vmem>>, vector<4x18xf32>,
    %cst_39 = arith.constant 0.000000e+00 : f32
    %73 = vector.broadcast %cst_39 : f32 to vector<4x2xf32>
    %c0_40 = arith.constant 0 : index
    %c324 = arith.constant 324 : index
    %74 = vector.load %arg6[%c0_40, %c324] : memref<4x326xf32, #tpu.memory_space<vmem>>, vector<4x2xf32>
    tpu.vector_store %arg6[%c0_40, %c324], %73 {strides = array<i32>} : memref<4x326xf32, #tpu.memory_space<vmem>>, vector<4x2xf32>,
    %c0_41 = arith.constant 0 : index
    %c0_42 = arith.constant 0 : index
    %75 = vector.load %arg4[%c0_41, %c0_42] : memref<4x36xf32, #tpu.memory_space<vmem>>, vector<4x36xf32>
    %c0_43 = arith.constant 0 : index
    %c0_44 = arith.constant 0 : index
    %76 = vector.load %arg6[%c0_43, %c0_44] : memref<4x326xf32, #tpu.memory_space<vmem>>, vector<4x288xf32>
    %c0_45 = arith.constant 0 : index
    %c0_46 = arith.constant 0 : index
    %77 = vector.load %arg8[%c0_45, %c0_46] : memref<36x288xf32, #tpu.memory_space<vmem>>, vector<4x288xf32>
    tpu.vector_store %arg8[%c0_45, %c0_46], %76 {strides = array<i32>} : memref<36x288xf32, #tpu.memory_space<vmem>>, vector<4x288xf32>,
    %c0_47 = arith.constant 0 : index
    %c1_48 = arith.constant 1 : index
    %78 = vector.load %arg6[%c0_47, %c1_48] : memref<4x326xf32, #tpu.memory_space<vmem>>, vector<4x288xf32>
    %c4_49 = arith.constant 4 : index
    %c0_50 = arith.constant 0 : index
    %79 = vector.load %arg8[%c4_49, %c0_50] : memref<36x288xf32, #tpu.memory_space<vmem>>, vector<4x288xf32>
    tpu.vector_store %arg8[%c4_49, %c0_50], %78 {strides = array<i32>} : memref<36x288xf32, #tpu.memory_space<vmem>>, vector<4x288xf32>,
    %c0_51 = arith.constant 0 : index
    %c2 = arith.constant 2 : index
    %80 = vector.load %arg6[%c0_51, %c2] : memref<4x326xf32, #tpu.memory_space<vmem>>, vector<4x288xf32>
    %c8_52 = arith.constant 8 : index
    %c0_53 = arith.constant 0 : index
    %81 = vector.load %arg8[%c8_52, %c0_53] : memref<36x288xf32, #tpu.memory_space<vmem>>, vector<4x288xf32>
    tpu.vector_store %arg8[%c8_52, %c0_53], %80 {strides = array<i32>} : memref<36x288xf32, #tpu.memory_space<vmem>>, vector<4x288xf32>,
    %c0_54 = arith.constant 0 : index
    %c18_55 = arith.constant 18 : index
    %82 = vector.load %arg6[%c0_54, %c18_55] : memref<4x326xf32, #tpu.memory_space<vmem>>, vector<4x288xf32>
    %c12_56 = arith.constant 12 : index
    %c0_57 = arith.constant 0 : index
    %83 = vector.load %arg8[%c12_56, %c0_57] : memref<36x288xf32, #tpu.memory_space<vmem>>, vector<4x288xf32>
    tpu.vector_store %arg8[%c12_56, %c0_57], %82 {strides = array<i32>} : memref<36x288xf32, #tpu.memory_space<vmem>>, vector<4x288xf32>,
    %c0_58 = arith.constant 0 : index
    %c19 = arith.constant 19 : index
    %84 = vector.load %arg6[%c0_58, %c19] : memref<4x326xf32, #tpu.memory_space<vmem>>, vector<4x288xf32>
    %c16_59 = arith.constant 16 : index
    %c0_60 = arith.constant 0 : index
    %85 = vector.load %arg8[%c16_59, %c0_60] : memref<36x288xf32, #tpu.memory_space<vmem>>, vector<4x288xf32>
    tpu.vector_store %arg8[%c16_59, %c0_60], %84 {strides = array<i32>} : memref<36x288xf32, #tpu.memory_space<vmem>>, vector<4x288xf32>,
    %c0_61 = arith.constant 0 : index
    %c20_62 = arith.constant 20 : index
    %86 = vector.load %arg6[%c0_61, %c20_62] : memref<4x326xf32, #tpu.memory_space<vmem>>, vector<4x288xf32>
    %c20_63 = arith.constant 20 : index
    %c0_64 = arith.constant 0 : index
    %87 = vector.load %arg8[%c20_63, %c0_64] : memref<36x288xf32, #tpu.memory_space<vmem>>, vector<4x288xf32>
    tpu.vector_store %arg8[%c20_63, %c0_64], %86 {strides = array<i32>} : memref<36x288xf32, #tpu.memory_space<vmem>>, vector<4x288xf32>,
    %c0_65 = arith.constant 0 : index
    %c36 = arith.constant 36 : index
    %88 = vector.load %arg6[%c0_65, %c36] : memref<4x326xf32, #tpu.memory_space<vmem>>, vector<4x288xf32>
    %c24_66 = arith.constant 24 : index
    %c0_67 = arith.constant 0 : index
    %89 = vector.load %arg8[%c24_66, %c0_67] : memref<36x288xf32, #tpu.memory_space<vmem>>, vector<4x288xf32>
    tpu.vector_store %arg8[%c24_66, %c0_67], %88 {strides = array<i32>} : memref<36x288xf32, #tpu.memory_space<vmem>>, vector<4x288xf32>,
    %c0_68 = arith.constant 0 : index
    %c37 = arith.constant 37 : index
    %90 = vector.load %arg6[%c0_68, %c37] : memref<4x326xf32, #tpu.memory_space<vmem>>, vector<4x288xf32>
    %c28_69 = arith.constant 28 : index
    %c0_70 = arith.constant 0 : index
    %91 = vector.load %arg8[%c28_69, %c0_70] : memref<36x288xf32, #tpu.memory_space<vmem>>, vector<4x288xf32>
    tpu.vector_store %arg8[%c28_69, %c0_70], %90 {strides = array<i32>} : memref<36x288xf32, #tpu.memory_space<vmem>>, vector<4x288xf32>,
    %c0_71 = arith.constant 0 : index
    %c38 = arith.constant 38 : index
    %92 = vector.load %arg6[%c0_71, %c38] : memref<4x326xf32, #tpu.memory_space<vmem>>, vector<4x288xf32>
    %c32_72 = arith.constant 32 : index
    %c0_73 = arith.constant 0 : index
    %93 = vector.load %arg8[%c32_72, %c0_73] : memref<36x288xf32, #tpu.memory_space<vmem>>, vector<4x288xf32>
    tpu.vector_store %arg8[%c32_72, %c0_73], %92 {strides = array<i32>} : memref<36x288xf32, #tpu.memory_space<vmem>>, vector<4x288xf32>,
    %c0_74 = arith.constant 0 : index
    %c0_75 = arith.constant 0 : index
    %94 = vector.load %arg8[%c0_74, %c0_75] : memref<36x288xf32, #tpu.memory_space<vmem>>, vector<36x288xf32>
    %cst_76 = arith.constant dense<0.000000e+00> : vector<4x288xf32>
    %95 = tpu.matmul %75, %94, %cst_76 {dimension_numbers = #tpu.dot_dimension_numbers<[1], [0], [0], [1], [0, 0, 1, 1], [], []>, precision = #tpu.contract_precision<fp32>} : vector<4x36xf32>, vector<36x288xf32>, vector<4x288xf32> -> vector<4x288xf32>
    %cst_77 = arith.constant 0.000000e+00 : f32
    %96 = vector.shape_cast %2 : vector<1x288xi1> to vector<1x288xi1>
    %97 = vector.broadcast %96 : vector<1x288xi1> to vector<4x288xi1>
    %98 = vector.broadcast %cst_77 : f32 to vector<4x288xf32>
    %99 = arith.select %97, %95, %98 : vector<4x288xi1>, vector<4x288xf32>
    %cst_78 = arith.constant dense<0.000000e+00> : vector<4xf32>
    %100 = vector.multi_reduction <add>, %99, %cst_78 [1] : vector<4x288xf32> to vector<4xf32>
    %101 = vector.shape_cast %100 : vector<4xf32> to vector<4x1xf32>
    %102 = arith.mulf %99, %99 : vector<4x288xf32>
    %cst_79 = arith.constant dense<0.000000e+00> : vector<4xf32>
    %103 = vector.multi_reduction <add>, %102, %cst_79 [1] : vector<4x288xf32> to vector<4xf32>
    %104 = vector.shape_cast %103 : vector<4xf32> to vector<4x1xf32>
    %cst_80 = arith.constant 3.906250e-03 : f32
    %105 = vector.broadcast %cst_80 : f32 to vector<4x1xf32>
    %106 = arith.mulf %101, %105 : vector<4x1xf32>
    %cst_81 = arith.constant 3.906250e-03 : f32
    %107 = vector.broadcast %cst_81 : f32 to vector<4x1xf32>
    %108 = arith.mulf %104, %107 : vector<4x1xf32>
    %109 = arith.mulf %106, %106 : vector<4x1xf32>
    %110 = arith.subf %108, %109 : vector<4x1xf32>
    %111 = vector.broadcast %106 : vector<4x1xf32> to vector<4x288xf32>
    %112 = arith.subf %95, %111 : vector<4x288xf32>
    %cst_82 = arith.constant 9.99999974E-6 : f32
    %113 = vector.broadcast %cst_82 : f32 to vector<4x1xf32>
    %114 = arith.addf %110, %113 : vector<4x1xf32>
    %115 = math.rsqrt %114 : vector<4x1xf32>
    %116 = vector.broadcast %115 : vector<4x1xf32> to vector<4x288xf32>
    %117 = arith.mulf %112, %116 : vector<4x288xf32>
    %118 = vector.extract_strided_slice %8 {offsets = [0, 19], sizes = [4, 288], strides = [1, 1]} : vector<4x326xf32> to vector<4x288xf32>
    %119 = arith.addf %118, %117 : vector<4x288xf32>
    %c0_83 = arith.constant 0 : index
    %c0_84 = arith.constant 0 : index
    %c0_85 = arith.constant 0 : index
    %120 = vector.load %arg5[%c0_83, %c0_84, %c0_85] : memref<1x4x288xf32, #tpu.memory_space<vmem>>, vector<1x4x288xf32>
    %121 = vector.shape_cast %120 : vector<1x4x288xf32> to vector<4x288xf32>
    %122 = vector.shape_cast %119 : vector<4x288xf32> to vector<1x4x288xf32>
    tpu.vector_store %arg5[%c0_83, %c0_84, %c0_85], %122 {strides = array<i32>} : memref<1x4x288xf32, #tpu.memory_space<vmem>>, vector<1x4x288xf32>,
    return
  }
  func.func @transform_0(%arg0: i32) -> (i32, i32) {
    %c0_i32 = arith.constant 0 : i32
    %c0_i32_0 = arith.constant 0 : i32
    %c0_i32_1 = arith.constant 0 : i32
    return %c0_i32, %c0_i32_0 : i32, i32
  }
  func.func @transform_1(%arg0: i32) -> (i32, i32, i32) {
    %c0_i32 = arith.constant 0 : i32
    %c0_i32_0 = arith.constant 0 : i32
    %c0_i32_1 = arith.constant 0 : i32
    return %arg0, %c0_i32, %c0_i32_0 : i32, i32, i32
  }
  func.func @transform_2(%arg0: i32) -> (i32, i32) {
    %c0_i32 = arith.constant 0 : i32
    %c0_i32_0 = arith.constant 0 : i32
    %c0_i32_1 = arith.constant 0 : i32
    return %c0_i32, %c0_i32_0 : i32, i32
  }
  func.func @transform_3(%arg0: i32) -> (i32, i32) {
    %c0_i32 = arith.constant 0 : i32
    %c0_i32_0 = arith.constant 0 : i32
    %c0_i32_1 = arith.constant 0 : i32
    return %c0_i32, %c0_i32_0 : i32, i32
  }
  func.func @transform_4(%arg0: i32) -> (i32, i32, i32) {
    %c0_i32 = arith.constant 0 : i32
    %c0_i32_0 = arith.constant 0 : i32
    %c0_i32_1 = arith.constant 0 : i32
    return %arg0, %c0_i32, %c0_i32_0 : i32, i32, i32
  }
}

</mosaic_0001>

<llo_original>
// kernel: tpu_custom_call.1
$region0: #{tpu_custom_call.1}
  #allocation0 [shape = 'u32[]', space=smem, size = 0x4, offset = 0x4, fixed_abs, tag = 'smem constant byte address 0x4 - core index']
  #allocation1 [shape = 'u32[72,128]{1,0:T(1,128)}', space=vmem, size = 0x9000, scoped, tag = 'internal scratch']
  #allocation2 [shape = 'f32[4,326]{1,0:T(4,128)}', space=vmem, size = 0x1800, scoped, tag = 'scratch operand']
  #allocation3 [shape = 'f32[4,296]{1,0:T(4,128)}', space=vmem, size = 0x1800, scoped, tag = 'scratch operand']
  #allocation4 [shape = 'f32[36,288]{1,0:T(8,128)}', space=vmem, size = 0xf000, scoped, tag = 'scratch operand']
  %s0 = inlined_call_operand.hbm [shape: s32[1,288], index: 0, kind: input, shape index: {}]
  %s1 = inlined_call_operand.hbm [shape: f32[2,4,326], index: 1, kind: input, shape index: {}]
  %s2 = inlined_call_operand.hbm [shape: f32[4,36], index: 2, kind: input, shape index: {}]
  %s3 = inlined_call_operand.hbm [shape: f32[4,36], index: 3, kind: input, shape index: {}]
  %s4 = inlined_call_operand.hbm [shape: f32[2,4,288], index: 4, kind: output, shape index: {}]
  %s5 = sld [smem:[#allocation0]]
  $region65: #{tpu_custom_call.1} parent=0
    _
  %s7 = ssub.s32 1, %s5
  %s8 = scalar_select 0, %s7, %s5
  $region1: #{tpu_custom_call.1} parent=0
    #allocation5 [shape = 'u8[1536]{0}', space=vmem, size = 0x800, scoped, tag = 'input window, operand 0, single buffered']
    #allocation6 [shape = 's32[2]{0}', space=sflag, size = 0x8, scoped, tag = 'scoped memory for tpu_custom_call.1']
    #allocation7 [shape = 's32[2]{0}', space=sflag, size = 0x8, scoped, tag = 'scoped memory for tpu_custom_call.1']
    #allocation8 [shape = 'u8[12288]{0}', space=vmem, size = 0x3000, scoped, tag = 'input window, operand 1']
    #allocation9 [shape = 's32[2]{0}', space=sflag, size = 0x8, scoped, tag = 'scoped memory for tpu_custom_call.1']
    #allocation10 [shape = 'u8[2048]{0}', space=vmem, size = 0x800, scoped, tag = 'input window, operand 2, single buffered']
    #allocation11 [shape = 'u8[2048]{0}', space=vmem, size = 0x800, scoped, tag = 'input window, operand 3, single buffered']
    #allocation12 [shape = 's32[1]{0}', space=sflag, size = 0x4, scoped, tag = 'scoped memory for tpu_custom_call.1']
    #allocation13 [shape = 'u8[12288]{0}', space=vmem, size = 0x3000, scoped, tag = 'output window, operand 0']
    %9 = vsyncpa [#allocation6], 0
    %10 = vsyncpa [#allocation9], 0
    %s11 = scalar_lea.sflag [#allocation9], 1
    %12 = vsyncpa %s11, 0
    %13 = vsyncpa [#allocation12], 0
    %14 = vsyncpa [#allocation7], 0
    %s15 = scalar_lea.sflag [#allocation7], 1
    %16 = vsyncpa %s15, 0
    loop: start=0, step=1, limit=4
    $region2: #{tpu_custom_call.1} parent=1 // loop_pre_header
      _
    $region3: #{tpu_custom_call.1} parent=1 // loop_header
      %s18 = sphi 0, %s22
      %p19 = scmp.ge.s32.totalorder %s18, 4
      %s26 = sphi 0, %s26
      %s28 = sphi 0, %s26
      %s29 = sphi 0, %s28
      %s43 = sphi 0, %s29
      %s49 = sphi 0, %s51
      %s52 = sphi 0, %s49
      %s53 = sphi 0, %s52
      %s69 = sphi 0, %s53
      %s73 = sphi 0, %s73
      %s75 = sphi 0, %s73
      %s76 = sphi 0, %s75
      %s90 = sphi 0, %s76
      %s94 = sphi 0, %s94
      %s96 = sphi 0, %s94
      %s97 = sphi 0, %s96
      %s111 = sphi 0, %s97
      %s117 = sphi 0, %s119
      %s120 = sphi 0, %s117
      %s121 = sphi 0, %s120
      %s137 = sphi 0, %s121
    $region4: #{tpu_custom_call.1} parent=1 // loop_header_branch
      %21 = sbr.rel (%p19) target = $region8
    $region5: #{tpu_custom_call.1} parent=1 // loop_body
      %s23 = ssub.s32 %s18, 1
      %s24 = ssub.s32 %s18, 2
      %s25 = sadd.s32 %s18, 1
      %s27 = sadd.s32 %s26, 1
      %p30 = scmp.eq.s32.totalorder %s18, 1
      %p31 = scmp.ne.s32.totalorder %s26, %s28
      %p32 = scmp.eq.s32.totalorder %s18, 0
      %p33 = por %p31, %p32
      %p34 = scmp.ne.s32.totalorder %s26, %s28
      %p35 = scmp.eq.s32.totalorder %s23, 1
      %p36 = por %p34, %p35
      %p37 = scmp.ne.s32.totalorder %s28, %s29
      %p38 = scmp.eq.s32.totalorder %s23, 0
      %p39 = por %p37, %p38
      %p40 = scmp.ne.s32.totalorder %s28, %s29
      %p41 = scmp.eq.s32.totalorder %s24, 1
      %p42 = por %p40, %p41
      %p44 = scmp.ne.s32.totalorder %s29, %s43
      %p45 = scmp.eq.s32.totalorder %s24, 0
      %p46 = por %p44, %p45
      %s47 = ssub.s32 %s18, %s25
      %p48 = scmp.eq.s32.totalorder %s47, 0
      %s50 = sadd.s32 %s49, 1
      %s51 = scalar_select %p48, %s49, %s50
      %p54 = pneg %p48
      %p55 = scmp.eq.s32.totalorder %s18, 1
      %p56 = por %p54, %p55
      %p57 = scmp.ne.s32.totalorder %s49, %s52
      %p58 = scmp.eq.s32.totalorder %s18, 0
      %p59 = por %p57, %p58
      %p60 = scmp.ne.s32.totalorder %s49, %s52
      %p61 = scmp.eq.s32.totalorder %s23, 1
      %p62 = por %p60, %p61
      %p63 = scmp.ne.s32.totalorder %s52, %s53
      %p64 = scmp.eq.s32.totalorder %s23, 0
      %p65 = por %p63, %p64
      %p66 = scmp.ne.s32.totalorder %s52, %s53
      %p67 = scmp.eq.s32.totalorder %s24, 1
      %p68 = por %p66, %p67
      %p70 = scmp.ne.s32.totalorder %s53, %s69
      %p71 = scmp.eq.s32.totalorder %s24, 0
      %p72 = por %p70, %p71
      %s74 = sadd.s32 %s73, 1
      %p77 = scmp.eq.s32.totalorder %s18, 1
      %p78 = scmp.ne.s32.totalorder %s73, %s75
      %p79 = scmp.eq.s32.totalorder %s18, 0
      %p80 = por %p78, %p79
      %p81 = scmp.ne.s32.totalorder %s73, %s75
      %p82 = scmp.eq.s32.totalorder %s23, 1
      %p83 = por %p81, %p82
      %p84 = scmp.ne.s32.totalorder %s75, %s76
      %p85 = scmp.eq.s32.totalorder %s23, 0
      %p86 = por %p84, %p85
      %p87 = scmp.ne.s32.totalorder %s75, %s76
      %p88 = scmp.eq.s32.totalorder %s24, 1
      %p89 = por %p87, %p88
      %p91 = scmp.ne.s32.totalorder %s76, %s90
      %p92 = scmp.eq.s32.totalorder %s24, 0
      %p93 = por %p91, %p92
      %s95 = sadd.s32 %s94, 1
      %p98 = scmp.eq.s32.totalorder %s18, 1
      %p99 = scmp.ne.s32.totalorder %s94, %s96
      %p100 = scmp.eq.s32.totalorder %s18, 0
      %p101 = por %p99, %p100
      %p102 = scmp.ne.s32.totalorder %s94, %s96
      %p103 = scmp.eq.s32.totalorder %s23, 1
      %p104 = por %p102, %p103
      %p105 = scmp.ne.s32.totalorder %s96, %s97
      %p106 = scmp.eq.s32.totalorder %s23, 0
      %p107 = por %p105, %p106
      %p108 = scmp.ne.s32.totalorder %s96, %s97
      %p109 = scmp.eq.s32.totalorder %s24, 1
      %p110 = por %p108, %p109
      %p112 = scmp.ne.s32.totalorder %s97, %s111
      %p113 = scmp.eq.s32.totalorder %s24, 0
      %p114 = por %p112, %p113
      %s115 = ssub.s32 %s18, %s25
      %p116 = scmp.eq.s32.totalorder %s115, 0
      %s118 = sadd.s32 %s117, 1
      %s119 = scalar_select %p116, %s117, %s118
      %p122 = pneg %p116
      %p123 = scmp.eq.s32.totalorder %s18, 1
      %p124 = por %p122, %p123
      %p125 = scmp.ne.s32.totalorder %s117, %s120
      %p126 = scmp.eq.s32.totalorder %s18, 0
      %p127 = por %p125, %p126
      %p128 = scmp.ne.s32.totalorder %s117, %s120
      %p129 = scmp.eq.s32.totalorder %s23, 1
      %p130 = por %p128, %p129
      %p131 = scmp.ne.s32.totalorder %s120, %s121
      %p132 = scmp.eq.s32.totalorder %s23, 0
      %p133 = por %p131, %p132
      %p134 = scmp.ne.s32.totalorder %s120, %s121
      %p135 = scmp.eq.s32.totalorder %s24, 1
      %p136 = por %p134, %p135
      %p138 = scmp.ne.s32.totalorder %s121, %s137
      %p139 = scmp.eq.s32.totalorder %s24, 0
      %p140 = por %p138, %p139
      %p141 = scmp.le.s32.totalorder 1, %s18
      %p142 = scmp.lt.s32.totalorder %s18, 3
      %p143 = pnand %p141, %p142
      %p144 = pneg %p143
      // Predicated region
      $region9: #{tpu_custom_call.1} parent=5 // pred_check
        _
      $region10: #{tpu_custom_call.1} parent=5 // pred_check_branch
        %146 = sbr.rel (%p143) target = $region12
      $region11: #{tpu_custom_call.1} parent=5 // pred_region
        %s147 = ssub.s32 %s18, 1
        // Predicated region
        $region13: #{tpu_custom_call.1} parent=11 // pred_check
          %p148 = pneg %p39
        $region14: #{tpu_custom_call.1} parent=11 // pred_check_branch
          %150 = sbr.rel (%p148) target = $region16
        $region15: #{tpu_custom_call.1} parent=11 // pred_region
          %152 = vsyncadd [#allocation6], 0
          %s154 = sshll.u32 %s0, 4
          %s155 = int_to_ptr.hbm [resolvable:$true] %s154
          %s156 = sshll.u32 [#allocation5], 4
          %s157 = int_to_ptr.vmem [resolvable:$true] %s156
          %159 = dma.hbm_to_vmem [thread:$0]  %s155, 48, %s157, [#allocation6]
        $region16: #{tpu_custom_call.1} parent=11 // pred_fallthru
          _
        // Predicated region
        $region17: #{tpu_custom_call.1} parent=11 // pred_check
          %p160 = pneg %p86
        $region18: #{tpu_custom_call.1} parent=11 // pred_check_branch
          %162 = sbr.rel (%p160) target = $region20
        $region19: #{tpu_custom_call.1} parent=11 // pred_region
          %164 = vsyncadd [#allocation9], 0
          %s166 = sshll.u32 %s2, 4
          %s167 = int_to_ptr.hbm [resolvable:$true] %s166
          %s168 = sshll.u32 [#allocation10], 4
          %s169 = int_to_ptr.vmem [resolvable:$true] %s168
          %171 = dma.hbm_to_vmem [thread:$0]  %s167, 64, %s169, [#allocation9]
        $region20: #{tpu_custom_call.1} parent=11 // pred_fallthru
          _
        // Predicated region
        $region21: #{tpu_custom_call.1} parent=11 // pred_check
          %p172 = pneg %p107
        $region22: #{tpu_custom_call.1} parent=11 // pred_check_branch
          %174 = sbr.rel (%p172) target = $region24
        $region23: #{tpu_custom_call.1} parent=11 // pred_region
          %176 = vsyncadd [#allocation12], 0
          %s178 = sshll.u32 %s3, 4
          %s179 = int_to_ptr.hbm [resolvable:$true] %s178
          %s180 = sshll.u32 [#allocation11], 4
          %s181 = int_to_ptr.vmem [resolvable:$true] %s180
          %183 = dma.hbm_to_vmem [thread:$0]  %s179, 64, %s181, [#allocation12]
        $region24: #{tpu_custom_call.1} parent=11 // pred_fallthru
          _
      $region12: #{tpu_custom_call.1} parent=5 // pred_fallthru
        _
      %p184 = scmp.lt.s32.totalorder %s18, 2
      // Predicated region
      $region25: #{tpu_custom_call.1} parent=5 // pred_check
        %p185 = pneg %p184
      $region26: #{tpu_custom_call.1} parent=5 // pred_check_branch
        %187 = sbr.rel (%p185) target = $region28
      $region27: #{tpu_custom_call.1} parent=5 // pred_region
        // Predicated region
        $region29: #{tpu_custom_call.1} parent=27 // pred_check
          %p188 = pneg %p59
        $region30: #{tpu_custom_call.1} parent=27 // pred_check_branch
          %190 = sbr.rel (%p188) target = $region32
        $region31: #{tpu_custom_call.1} parent=27 // pred_region
          %s191 = sand.u32 %s18, 1
          %s192 = scalar_lea.sflag [#allocation9], %s191
          %s193 = sand.u32 %s49, 1
          %s194 = smul.addr %s193, 12
          %s195 = scalar_lea.vmem [#allocation8], %s194
          %197 = vsyncadd %s192, 0
          %s198 = smul.addr %s18, 3
          %s199 = smul.addr %s198, 4
          %s200 = scalar_lea.hbm %s1, %s199
          %s202 = sshll.u32 %s200, 4
          %s203 = int_to_ptr.hbm [resolvable:$true] %s202
          %s204 = sshll.u32 %s195, 4
          %s205 = int_to_ptr.vmem [resolvable:$true] %s204
          %207 = dma.hbm_to_vmem [thread:$0]  %s203, 192, %s205, %s192
        $region32: #{tpu_custom_call.1} parent=27 // pred_fallthru
          _
      $region28: #{tpu_custom_call.1} parent=5 // pred_fallthru
        _
      %p208 = scmp.le.s32.totalorder 1, %s18
      %p209 = scmp.lt.s32.totalorder %s18, 3
      %p210 = pnand %p208, %p209
      %p211 = pneg %p210
      // Predicated region
      $region33: #{tpu_custom_call.1} parent=5 // pred_check
        _
      $region34: #{tpu_custom_call.1} parent=5 // pred_check_branch
        %213 = sbr.rel (%p210) target = $region36
      $region35: #{tpu_custom_call.1} parent=5 // pred_region
        %s214 = ssub.s32 %s18, 1
        // Predicated region
        $region37: #{tpu_custom_call.1} parent=35 // pred_check
          %p215 = pneg %p39
        $region38: #{tpu_custom_call.1} parent=35 // pred_check_branch
          %217 = sbr.rel (%p215) target = $region40
        $region39: #{tpu_custom_call.1} parent=35 // pred_region
          %219 = dma.done [#allocation6], 48
        $region40: #{tpu_custom_call.1} parent=35 // pred_fallthru
          _
        %s220 = sand.u32 %s23, 1
        %s221 = scalar_lea.sflag [#allocation9], %s220
        %s222 = sand.u32 %s52, 1
        %s223 = smul.addr %s222, 12
        %s224 = scalar_lea.vmem [#allocation8], %s223
        // Predicated region
        $region41: #{tpu_custom_call.1} parent=35 // pred_check
          %p225 = pneg %p65
        $region42: #{tpu_custom_call.1} parent=35 // pred_check_branch
          %227 = sbr.rel (%p225) target = $region44
        $region43: #{tpu_custom_call.1} parent=35 // pred_region
          %229 = dma.done %s221, 192
        $region44: #{tpu_custom_call.1} parent=35 // pred_fallthru
          _
        // Predicated region
        $region45: #{tpu_custom_call.1} parent=35 // pred_check
          %p230 = pneg %p86
        $region46: #{tpu_custom_call.1} parent=35 // pred_check_branch
          %232 = sbr.rel (%p230) target = $region48
        $region47: #{tpu_custom_call.1} parent=35 // pred_region
          %234 = dma.done [#allocation9], 64
        $region48: #{tpu_custom_call.1} parent=35 // pred_fallthru
          _
        // Predicated region
        $region49: #{tpu_custom_call.1} parent=35 // pred_check
          %p235 = pneg %p107
        $region50: #{tpu_custom_call.1} parent=35 // pred_check_branch
          %237 = sbr.rel (%p235) target = $region52
        $region51: #{tpu_custom_call.1} parent=35 // pred_region
          %239 = dma.done [#allocation12], 64
        $region52: #{tpu_custom_call.1} parent=35 // pred_fallthru
          _
        %p240 = pneg %p39
        %p241 = pneg %p36
        %s242 = sand.u32 %s23, 1
        %s243 = scalar_lea.sflag [#allocation9], %s242
        %s244 = sand.u32 %s52, 1
        %s245 = smul.addr %s244, 12
        %s246 = scalar_lea.vmem [#allocation8], %s245
        %p247 = pneg %p65
        %p248 = pneg %p62
        %p249 = pneg %p86
        %p250 = pneg %p83
        %p251 = pneg %p107
        %p252 = pneg %p104
        %p253 = pneg %p133
        %p254 = pneg %p130
        %s255 = sand.u32 %s120, 1
        %s256 = scalar_lea.sflag [#allocation7], %s255
        %s257 = sand.u32 %s120, 1
        %s258 = smul.addr %s257, 12
        %s259 = scalar_lea.vmem [#allocation13], %s258
        %v260 = vld [vmem:[#allocation5] sm:$0x7]
        %vm261 = vcmp.lt.s32.totalorder %v260, 16
        %vm262 = vcmp.eq.s32.totalorder %v260, 0
        %vm263 = vcmp.eq.s32.totalorder %v260, 17
        %v264 = vld [vmem:[%s224] sm:$0xff]
        %v265 = vld [vmem:[%s224 + $0x8] sm:$0xf]
        %v266 = vld [vmem:[#allocation10] sm:$0xf]
        %269 = vst [vmem:[#allocation1] ss:$2 sm:$0xff] %v264
        %s270 = scalar_lea.vmem [#allocation1], 16
        %271 = vst [vmem:[%s270] ss:$2 sm:$0xff] %v265
        %v272 = vld.sshfl [vmem:[#allocation1] sm:$0xff pattern:$0x75316420]
        %v273 = vld.sshfl [vmem:[#allocation1 + $0x8] sm:$0xff pattern:$0x75316420]
        %v274 = vld.sshfl [vmem:[#allocation1 + $0x10] sm:$0xff pattern:$0x75316420]
        %278 = vst [vmem:[#allocation4] sm:$0xf] %v272
        %279 = vst [vmem:[#allocation4 + $0x8] sm:$0xf] %v273
        %vm280 = vcmask 257024
        %281 = vst.msk [vmem:[#allocation4 + $0x10] sm:$0xf] %vm280, %v274
        %s282 = scalar_lea.vmem [#allocation1], 1
        %283 = vst [vmem:[%s282] ss:$2 sm:$0xff] %v264
        %s284 = scalar_lea.vmem [#allocation1], 17
        %285 = vst [vmem:[%s284] ss:$2 sm:$0xff] %v265
        %v286 = vld.sshfl [vmem:[#allocation1] sm:$0xff pattern:$0x75316420]
        %v287 = vld.sshfl [vmem:[#allocation1 + $0x8] sm:$0xff pattern:$0x75316420]
        %v288 = vld.sshfl [vmem:[#allocation1 + $0x10] sm:$0xff pattern:$0x75316420]
        %289 = vrot.lane.b32.xlu0 %v286, 127
        %v290 = vpop.permute.xlu0 %289
        %291 = vrot.lane.b32.xlu0 %v287, 127
        %v292 = vpop.permute.xlu0 %291
        %293 = vrot.lane.b32.xlu0 %v288, 127
        %v294 = vpop.permute.xlu0 %293
        %vm295 = vcmask 1039360
        %v296 = vsel %vm295, %v290, %v292
        %v297 = vsel %vm295, %v292, %v294
        %301 = vst [vmem:[#allocation4] sm:$0xf0] %v296
        %302 = vst [vmem:[#allocation4 + $0x8] sm:$0xf0] %v297
        %vm303 = vcmask 261124
        %304 = vst.msk [vmem:[#allocation4 + $0x10] sm:$0xf0] %vm303, %v294
        %305 = vst [vmem:[#allocation1] ss:$2 sm:$0xff] %v264
        %s306 = scalar_lea.vmem [#allocation1], 16
        %307 = vst [vmem:[%s306] ss:$2 sm:$0xff] %v265
        %v308 = vld.sshfl [vmem:[#allocation1] sm:$0xff pattern:$0x75316420]
        %v309 = vld.sshfl [vmem:[#allocation1 + $0x8] sm:$0xff pattern:$0x75316420]
        %v310 = vld.sshfl [vmem:[#allocation1 + $0x10] sm:$0xff pattern:$0x75316420]
        %311 = vrot.lane.b32.xlu0 %v308, 126
        %v312 = vpop.permute.xlu0 %311
        %313 = vrot.lane.b32.xlu0 %v309, 126
        %v314 = vpop.permute.xlu0 %313
        %315 = vrot.lane.b32.xlu0 %v310, 126
        %v316 = vpop.permute.xlu0 %315
        %vm317 = vcmask 1031168
        %v318 = vsel %vm317, %v312, %v314
        %v319 = vsel %vm317, %v314, %v316
        %323 = vst [vmem:[#allocation4 + $0x18] sm:$0xf] %v318
        %324 = vst [vmem:[#allocation4 + $0x20] sm:$0xf] %v319
        %325 = vst.msk [vmem:[#allocation4 + $0x28] sm:$0xf] %vm280, %v316
        %s326 = scalar_lea.vmem [#allocation1], 1
        %327 = vst [vmem:[%s326] ss:$2 sm:$0xff] %v264
        %s328 = scalar_lea.vmem [#allocation1], 17
        %329 = vst [vmem:[%s328] ss:$2 sm:$0xff] %v265
        %v330 = vld.sshfl [vmem:[#allocation1] sm:$0xff pattern:$0x75316420]
        %v331 = vld.sshfl [vmem:[#allocation1 + $0x8] sm:$0xff pattern:$0x75316420]
        %v332 = vld.sshfl [vmem:[#allocation1 + $0x10] sm:$0xff pattern:$0x75316420]
        %333 = vrot.lane.b32.xlu0 %v330, 110
        %v334 = vpop.permute.xlu0 %333
        %335 = vrot.lane.b32.xlu0 %v331, 110
        %v336 = vpop.permute.xlu0 %335
        %337 = vrot.lane.b32.xlu0 %v332, 110
        %v338 = vpop.permute.xlu0 %337
        %vm339 = vcmask 900096
        %v340 = vsel %vm339, %v334, %v336
        %v341 = vsel %vm339, %v336, %v338
        %345 = vst [vmem:[#allocation4 + $0x18] sm:$0xf0] %v340
        %346 = vst [vmem:[#allocation4 + $0x20] sm:$0xf0] %v341
        %347 = vst.msk [vmem:[#allocation4 + $0x28] sm:$0xf0] %vm303, %v338
        %348 = vst [vmem:[#allocation1] ss:$2 sm:$0xff] %v264
        %s349 = scalar_lea.vmem [#allocation1], 16
        %350 = vst [vmem:[%s349] ss:$2 sm:$0xff] %v265
        %v351 = vld.sshfl [vmem:[#allocation1] sm:$0xff pattern:$0x75316420]
        %v352 = vld.sshfl [vmem:[#allocation1 + $0x8] sm:$0xff pattern:$0x75316420]
        %v353 = vld.sshfl [vmem:[#allocation1 + $0x10] sm:$0xff pattern:$0x75316420]
        %354 = vrot.lane.b32.xlu0 %v351, 109
        %v355 = vpop.permute.xlu0 %354
        %356 = vrot.lane.b32.xlu0 %v352, 109
        %v357 = vpop.permute.xlu0 %356
        %358 = vrot.lane.b32.xlu0 %v353, 109
        %v359 = vpop.permute.xlu0 %358
        %vm360 = vcmask 891904
        %v361 = vsel %vm360, %v355, %v357
        %v362 = vsel %vm360, %v357, %v359
        %366 = vst [vmem:[#allocation4 + $0x30] sm:$0xf] %v361
        %367 = vst [vmem:[#allocation4 + $0x38] sm:$0xf] %v362
        %368 = vst.msk [vmem:[#allocation4 + $0x40] sm:$0xf] %vm280, %v359
        %s369 = scalar_lea.vmem [#allocation1], 1
        %370 = vst [vmem:[%s369] ss:$2 sm:$0xff] %v264
        %s371 = scalar_lea.vmem [#allocation1], 17
        %372 = vst [vmem:[%s371] ss:$2 sm:$0xff] %v265
        %v373 = vld.sshfl [vmem:[#allocation1] sm:$0xff pattern:$0x75316420]
        %v374 = vld.sshfl [vmem:[#allocation1 + $0x8] sm:$0xff pattern:$0x75316420]
        %v375 = vld.sshfl [vmem:[#allocation1 + $0x10] sm:$0xff pattern:$0x75316420]
        %376 = vrot.lane.b32.xlu0 %v373, 108
        %v377 = vpop.permute.xlu0 %376
        %378 = vrot.lane.b32.xlu0 %v374, 108
        %v379 = vpop.permute.xlu0 %378
        %380 = vrot.lane.b32.xlu0 %v375, 108
        %v381 = vpop.permute.xlu0 %380
        %vm382 = vcmask 883712
        %v383 = vsel %vm382, %v377, %v379
        %v384 = vsel %vm382, %v379, %v381
        %388 = vst [vmem:[#allocation4 + $0x30] sm:$0xf0] %v383
        %389 = vst [vmem:[#allocation4 + $0x38] sm:$0xf0] %v384
        %390 = vst.msk [vmem:[#allocation4 + $0x40] sm:$0xf0] %vm303, %v381
        %391 = vst [vmem:[#allocation1] ss:$2 sm:$0xff] %v264
        %s392 = scalar_lea.vmem [#allocation1], 16
        %393 = vst [vmem:[%s392] ss:$2 sm:$0xff] %v265
        %v394 = vld.sshfl [vmem:[#allocation1] sm:$0xff pattern:$0x75316420]
        %v395 = vld.sshfl [vmem:[#allocation1 + $0x8] sm:$0xff pattern:$0x75316420]
        %v396 = vld.sshfl [vmem:[#allocation1 + $0x10] sm:$0xff pattern:$0x75316420]
        %397 = vrot.lane.b32.xlu0 %v394, 92
        %v398 = vpop.permute.xlu0 %397
        %399 = vrot.lane.b32.xlu0 %v395, 92
        %v400 = vpop.permute.xlu0 %399
        %401 = vrot.lane.b32.xlu0 %v396, 92
        %v402 = vpop.permute.xlu0 %401
        %vm403 = vcmask 752640
        %v404 = vsel %vm403, %v398, %v400
        %v405 = vsel %vm403, %v400, %v402
        %409 = vst [vmem:[#allocation4 + $0x48] sm:$0xf] %v404
        %410 = vst [vmem:[#allocation4 + $0x50] sm:$0xf] %v405
        %411 = vst.msk [vmem:[#allocation4 + $0x58] sm:$0xf] %vm280, %v402
        %s412 = scalar_lea.vmem [#allocation1], 1
        %413 = vst [vmem:[%s412] ss:$2 sm:$0xff] %v264
        %s414 = scalar_lea.vmem [#allocation1], 17
        %415 = vst [vmem:[%s414] ss:$2 sm:$0xff] %v265
        %v416 = vld.sshfl [vmem:[#allocation1] sm:$0xff pattern:$0x75316420]
        %v417 = vld.sshfl [vmem:[#allocation1 + $0x8] sm:$0xff pattern:$0x75316420]
        %v418 = vld.sshfl [vmem:[#allocation1 + $0x10] sm:$0xff pattern:$0x75316420]
        %419 = vrot.lane.b32.xlu0 %v416, 91
        %v420 = vpop.permute.xlu0 %419
        %421 = vrot.lane.b32.xlu0 %v417, 91
        %v422 = vpop.permute.xlu0 %421
        %423 = vrot.lane.b32.xlu0 %v418, 91
        %v424 = vpop.permute.xlu0 %423
        %vm425 = vcmask 744448
        %v426 = vsel %vm425, %v420, %v422
        %v427 = vsel %vm425, %v422, %v424
        %431 = vst [vmem:[#allocation4 + $0x48] sm:$0xf0] %v426
        %432 = vst [vmem:[#allocation4 + $0x50] sm:$0xf0] %v427
        %433 = vst.msk [vmem:[#allocation4 + $0x58] sm:$0xf0] %vm303, %v424
        %434 = vst [vmem:[#allocation1] ss:$2 sm:$0xff] %v264
        %s435 = scalar_lea.vmem [#allocation1], 16
        %436 = vst [vmem:[%s435] ss:$2 sm:$0xff] %v265
        %v437 = vld.sshfl [vmem:[#allocation1] sm:$0xff pattern:$0x75316420]
        %v438 = vld.sshfl [vmem:[#allocation1 + $0x8] sm:$0xff pattern:$0x75316420]
        %v439 = vld.sshfl [vmem:[#allocation1 + $0x10] sm:$0xff pattern:$0x75316420]
        %440 = vrot.lane.b32.xlu0 %v437, 90
        %v441 = vpop.permute.xlu0 %440
        %442 = vrot.lane.b32.xlu0 %v438, 90
        %v443 = vpop.permute.xlu0 %442
        %444 = vrot.lane.b32.xlu0 %v439, 90
        %v445 = vpop.permute.xlu0 %444
        %vm446 = vcmask 736256
        %v447 = vsel %vm446, %v441, %v443
        %v448 = vsel %vm446, %v443, %v445
        %452 = vst [vmem:[#allocation4 + $0x60] sm:$0xf] %v447
        %453 = vst [vmem:[#allocation4 + $0x68] sm:$0xf] %v448
        %454 = vst.msk [vmem:[#allocation4 + $0x70] sm:$0xf] %vm280, %v445
        %v455 = vld [vmem:[#allocation4] sm:$0xff]
        %v456 = vld [vmem:[#allocation4 + $0x8] sm:$0xff]
        %v457 = vld [vmem:[#allocation4 + $0x10] sm:$0xff]
        %v458 = vld [vmem:[#allocation4 + $0x18] sm:$0xff]
        %v459 = vld [vmem:[#allocation4 + $0x20] sm:$0xff]
        %v460 = vld [vmem:[#allocation4 + $0x28] sm:$0xff]
        %v461 = vld [vmem:[#allocation4 + $0x30] sm:$0xff]
        %v462 = vld [vmem:[#allocation4 + $0x38] sm:$0xff]
        %v463 = vld [vmem:[#allocation4 + $0x40] sm:$0xff]
        %v464 = vld [vmem:[#allocation4 + $0x48] sm:$0xff]
        %v465 = vld [vmem:[#allocation4 + $0x50] sm:$0xff]
        %v466 = vld [vmem:[#allocation4 + $0x58] sm:$0xff]
        %v467 = vld [vmem:[#allocation4 + $0x60] sm:$0xf]
        %v468 = vld [vmem:[#allocation4 + $0x68] sm:$0xf]
        %v469 = vld [vmem:[#allocation4 + $0x70] sm:$0xf]
        %vm470 = vcmask 293888
        %v472 = vsel %vm470, %v266, 0
        %vm474 = vcmask 1043456
        %v476 = vsel %vm474, %v467, 0
        %v479 = vsel %vm474, %v468, 0
        %v482 = vsel %vm474, %v469, 0
        %484 = vmatpush.msra.mxu0 0.0
        %485 = vmatpush.msra.mxu0 0.0
        %486 = vmatpush.msra.mxu0 0.0
        %487 = vmatpush.msra.mxu0 0.0
        %488 = vmatpush.msra.mxu0 0.0
        %489 = vmatpush.msra.mxu0 0.0
        %490 = vmatpush.msra.mxu0 0.0
        %491 = vmatpush.msra.mxu0 0.0
        %492 = vmatpush.msra.mxu0 0.0
        %493 = vmatpush.msra.mxu0 0.0
        %494 = vmatpush.msra.mxu0 0.0
        %v495 = vand.u32 %v476, 4294901760
        %496 = vmatpush.msra.mxu0 %v495
        %v497 = vand.u32 %v464, 4294901760
        %498 = vmatpush.msra.mxu0 %v497
        %v499 = vand.u32 %v461, 4294901760
        %500 = vmatpush.msra.mxu0 %v499
        %v501 = vand.u32 %v458, 4294901760
        %502 = vmatpush.msra.mxu0 %v501
        %v503 = vand.u32 %v455, 4294901760
        %504 = vmatpush.msra.mxu0 %v503
        %v505 = vand.u32 %v472, 4294901760
        %v506 = vsub.f32 %v472, %v505
        %v507 = vand.u32 %v506, 4294901760
        %v508 = vsub.f32 %v506, %v507
        %v509 = vand.u32 %v508, 4294901760
        %510 = vmatmul.f32.gmra.mxu0 %v509
        %v511 = vpop.f32.mrf.mxu0
        %v512 = vadd.f32 0.0, %v511
        %513 = vdwg.mxu0
        %514 = vmatpush.msra.mxu0 0.0
        %515 = vmatpush.msra.mxu0 0.0
        %516 = vmatpush.msra.mxu0 0.0
        %517 = vmatpush.msra.mxu0 0.0
        %518 = vmatpush.msra.mxu0 0.0
        %519 = vmatpush.msra.mxu0 0.0
        %520 = vmatpush.msra.mxu0 0.0
        %521 = vmatpush.msra.mxu0 0.0
        %522 = vmatpush.msra.mxu0 0.0
        %523 = vmatpush.msra.mxu0 0.0
        %524 = vmatpush.msra.mxu0 0.0
        %v525 = vand.u32 %v476, 4294901760
        %v526 = vsub.f32 %v476, %v525
        %v527 = vand.u32 %v526, 4294901760
        %v528 = vsub.f32 %v526, %v527
        %v529 = vand.u32 %v528, 4294901760
        %530 = vmatpush.msra.mxu0 %v529
        %v531 = vand.u32 %v464, 4294901760
        %v532 = vsub.f32 %v464, %v531
        %v533 = vand.u32 %v532, 4294901760
        %v534 = vsub.f32 %v532, %v533
        %v535 = vand.u32 %v534, 4294901760
        %536 = vmatpush.msra.mxu0 %v535
        %v537 = vand.u32 %v461, 4294901760
        %v538 = vsub.f32 %v461, %v537
        %v539 = vand.u32 %v538, 4294901760
        %v540 = vsub.f32 %v538, %v539
        %v541 = vand.u32 %v540, 4294901760
        %542 = vmatpush.msra.mxu0 %v541
        %v543 = vand.u32 %v458, 4294901760
        %v544 = vsub.f32 %v458, %v543
        %v545 = vand.u32 %v544, 4294901760
        %v546 = vsub.f32 %v544, %v545
        %v547 = vand.u32 %v546, 4294901760
        %548 = vmatpush.msra.mxu0 %v547
        %v549 = vand.u32 %v455, 4294901760
        %v550 = vsub.f32 %v455, %v549
        %v551 = vand.u32 %v550, 4294901760
        %v552 = vsub.f32 %v550, %v551
        %v553 = vand.u32 %v552, 4294901760
        %554 = vmatpush.msra.mxu0 %v553
        %v555 = vand.u32 %v472, 4294901760
        %556 = vmatmul.f32.gmra.mxu0 %v555
        %v557 = vpop.f32.mrf.mxu0
        %v558 = vadd.f32 %v512, %v557
        %559 = vdwg.mxu0
        %560 = vmatpush.msra.mxu0 0.0
        %561 = vmatpush.msra.mxu0 0.0
        %562 = vmatpush.msra.mxu0 0.0
        %563 = vmatpush.msra.mxu0 0.0
        %564 = vmatpush.msra.mxu0 0.0
        %565 = vmatpush.msra.mxu0 0.0
        %566 = vmatpush.msra.mxu0 0.0
        %567 = vmatpush.msra.mxu0 0.0
        %568 = vmatpush.msra.mxu0 0.0
        %569 = vmatpush.msra.mxu0 0.0
        %570 = vmatpush.msra.mxu0 0.0
        %v571 = vand.u32 %v476, 4294901760
        %v572 = vsub.f32 %v476, %v571
        %573 = vmatpush.msra.mxu0 %v572
        %v574 = vand.u32 %v464, 4294901760
        %v575 = vsub.f32 %v464, %v574
        %576 = vmatpush.msra.mxu0 %v575
        %v577 = vand.u32 %v461, 4294901760
        %v578 = vsub.f32 %v461, %v577
        %579 = vmatpush.msra.mxu0 %v578
        %v580 = vand.u32 %v458, 4294901760
        %v581 = vsub.f32 %v458, %v580
        %582 = vmatpush.msra.mxu0 %v581
        %v583 = vand.u32 %v455, 4294901760
        %v584 = vsub.f32 %v455, %v583
        %585 = vmatpush.msra.mxu0 %v584
        %v586 = vand.u32 %v472, 4294901760
        %v587 = vsub.f32 %v472, %v586
        %588 = vmatmul.f32.gmra.mxu0 %v587
        %v589 = vpop.f32.mrf.mxu0
        %v590 = vadd.f32 %v558, %v589
        %591 = vdwg.mxu0
        %592 = vmatpush.msra.mxu0 0.0
        %593 = vmatpush.msra.mxu0 0.0
        %594 = vmatpush.msra.mxu0 0.0
        %595 = vmatpush.msra.mxu0 0.0
        %596 = vmatpush.msra.mxu0 0.0
        %597 = vmatpush.msra.mxu0 0.0
        %598 = vmatpush.msra.mxu0 0.0
        %599 = vmatpush.msra.mxu0 0.0
        %600 = vmatpush.msra.mxu0 0.0
        %601 = vmatpush.msra.mxu0 0.0
        %602 = vmatpush.msra.mxu0 0.0
        %v603 = vand.u32 %v476, 4294901760
        %604 = vmatpush.msra.mxu0 %v603
        %v605 = vand.u32 %v464, 4294901760
        %606 = vmatpush.msra.mxu0 %v605
        %v607 = vand.u32 %v461, 4294901760
        %608 = vmatpush.msra.mxu0 %v607
        %v609 = vand.u32 %v458, 4294901760
        %610 = vmatpush.msra.mxu0 %v609
        %v611 = vand.u32 %v455, 4294901760
        %612 = vmatpush.msra.mxu0 %v611
        %v613 = vand.u32 %v472, 4294901760
        %v614 = vsub.f32 %v472, %v613
        %v615 = vand.u32 %v614, 4294901760
        %616 = vmatmul.f32.gmra.mxu0 %v615
        %v617 = vpop.f32.mrf.mxu0
        %v618 = vadd.f32 %v590, %v617
        %619 = vdwg.mxu0
        %620 = vmatpush.msra.mxu0 0.0
        %621 = vmatpush.msra.mxu0 0.0
        %622 = vmatpush.msra.mxu0 0.0
        %623 = vmatpush.msra.mxu0 0.0
        %624 = vmatpush.msra.mxu0 0.0
        %625 = vmatpush.msra.mxu0 0.0
        %626 = vmatpush.msra.mxu0 0.0
        %627 = vmatpush.msra.mxu0 0.0
        %628 = vmatpush.msra.mxu0 0.0
        %629 = vmatpush.msra.mxu0 0.0
        %630 = vmatpush.msra.mxu0 0.0
        %v631 = vand.u32 %v476, 4294901760
        %v632 = vsub.f32 %v476, %v631
        %v633 = vand.u32 %v632, 4294901760
        %634 = vmatpush.msra.mxu0 %v633
        %v635 = vand.u32 %v464, 4294901760
        %v636 = vsub.f32 %v464, %v635
        %v637 = vand.u32 %v636, 4294901760
        %638 = vmatpush.msra.mxu0 %v637
        %v639 = vand.u32 %v461, 4294901760
        %v640 = vsub.f32 %v461, %v639
        %v641 = vand.u32 %v640, 4294901760
        %642 = vmatpush.msra.mxu0 %v641
        %v643 = vand.u32 %v458, 4294901760
        %v644 = vsub.f32 %v458, %v643
        %v645 = vand.u32 %v644, 4294901760
        %646 = vmatpush.msra.mxu0 %v645
        %v647 = vand.u32 %v455, 4294901760
        %v648 = vsub.f32 %v455, %v647
        %v649 = vand.u32 %v648, 4294901760
        %650 = vmatpush.msra.mxu0 %v649
        %v651 = vand.u32 %v472, 4294901760
        %652 = vmatmul.f32.gmra.mxu0 %v651
        %v653 = vpop.f32.mrf.mxu0
        %v654 = vadd.f32 %v618, %v653
        %655 = vdwg.mxu0
        %656 = vmatpush.msra.mxu0 0.0
        %657 = vmatpush.msra.mxu0 0.0
        %658 = vmatpush.msra.mxu0 0.0
        %659 = vmatpush.msra.mxu0 0.0
        %660 = vmatpush.msra.mxu0 0.0
        %661 = vmatpush.msra.mxu0 0.0
        %662 = vmatpush.msra.mxu0 0.0
        %663 = vmatpush.msra.mxu0 0.0
        %664 = vmatpush.msra.mxu0 0.0
        %665 = vmatpush.msra.mxu0 0.0
        %666 = vmatpush.msra.mxu0 0.0
        %v667 = vand.u32 %v476, 4294901760
        %668 = vmatpush.msra.mxu0 %v667
        %v669 = vand.u32 %v464, 4294901760
        %670 = vmatpush.msra.mxu0 %v669
        %v671 = vand.u32 %v461, 4294901760
        %672 = vmatpush.msra.mxu0 %v671
        %v673 = vand.u32 %v458, 4294901760
        %674 = vmatpush.msra.mxu0 %v673
        %v675 = vand.u32 %v455, 4294901760
        %676 = vmatpush.msra.mxu0 %v675
        %v677 = vand.u32 %v472, 4294901760
        %678 = vmatmul.f32.gmra.mxu0 %v677
        %v679 = vpop.f32.mrf.mxu0
        %v680 = vadd.f32 %v654, %v679
        %681 = vdwg.mxu0
        %682 = vmatpush.msra.mxu0 0.0
        %683 = vmatpush.msra.mxu0 0.0
        %684 = vmatpush.msra.mxu0 0.0
        %685 = vmatpush.msra.mxu0 0.0
        %686 = vmatpush.msra.mxu0 0.0
        %687 = vmatpush.msra.mxu0 0.0
        %688 = vmatpush.msra.mxu0 0.0
        %689 = vmatpush.msra.mxu0 0.0
        %690 = vmatpush.msra.mxu0 0.0
        %691 = vmatpush.msra.mxu0 0.0
        %692 = vmatpush.msra.mxu0 0.0
        %v693 = vand.u32 %v479, 4294901760
        %694 = vmatpush.msra.mxu0 %v693
        %v695 = vand.u32 %v465, 4294901760
        %696 = vmatpush.msra.mxu0 %v695
        %v697 = vand.u32 %v462, 4294901760
        %698 = vmatpush.msra.mxu0 %v697
        %v699 = vand.u32 %v459, 4294901760
        %700 = vmatpush.msra.mxu0 %v699
        %v701 = vand.u32 %v456, 4294901760
        %702 = vmatpush.msra.mxu0 %v701
        %v703 = vand.u32 %v472, 4294901760
        %v704 = vsub.f32 %v472, %v703
        %v705 = vand.u32 %v704, 4294901760
        %v706 = vsub.f32 %v704, %v705
        %v707 = vand.u32 %v706, 4294901760
        %708 = vmatmul.f32.gmra.mxu0 %v707
        %v709 = vpop.f32.mrf.mxu0
        %v710 = vadd.f32 0.0, %v709
        %711 = vdwg.mxu0
        %712 = vmatpush.msra.mxu0 0.0
        %713 = vmatpush.msra.mxu0 0.0
        %714 = vmatpush.msra.mxu0 0.0
        %715 = vmatpush.msra.mxu0 0.0
        %716 = vmatpush.msra.mxu0 0.0
        %717 = vmatpush.msra.mxu0 0.0
        %718 = vmatpush.msra.mxu0 0.0
        %719 = vmatpush.msra.mxu0 0.0
        %720 = vmatpush.msra.mxu0 0.0
        %721 = vmatpush.msra.mxu0 0.0
        %722 = vmatpush.msra.mxu0 0.0
        %v723 = vand.u32 %v479, 4294901760
        %v724 = vsub.f32 %v479, %v723
        %v725 = vand.u32 %v724, 4294901760
        %v726 = vsub.f32 %v724, %v725
        %v727 = vand.u32 %v726, 4294901760
        %728 = vmatpush.msra.mxu0 %v727
        %v729 = vand.u32 %v465, 4294901760
        %v730 = vsub.f32 %v465, %v729
        %v731 = vand.u32 %v730, 4294901760
        %v732 = vsub.f32 %v730, %v731
        %v733 = vand.u32 %v732, 4294901760
        %734 = vmatpush.msra.mxu0 %v733
        %v735 = vand.u32 %v462, 4294901760
        %v736 = vsub.f32 %v462, %v735
        %v737 = vand.u32 %v736, 4294901760
        %v738 = vsub.f32 %v736, %v737
        %v739 = vand.u32 %v738, 4294901760
        %740 = vmatpush.msra.mxu0 %v739
        %v741 = vand.u32 %v459, 4294901760
        %v742 = vsub.f32 %v459, %v741
        %v743 = vand.u32 %v742, 4294901760
        %v744 = vsub.f32 %v742, %v743
        %v745 = vand.u32 %v744, 4294901760
        %746 = vmatpush.msra.mxu0 %v745
        %v747 = vand.u32 %v456, 4294901760
        %v748 = vsub.f32 %v456, %v747
        %v749 = vand.u32 %v748, 4294901760
        %v750 = vsub.f32 %v748, %v749
        %v751 = vand.u32 %v750, 4294901760
        %752 = vmatpush.msra.mxu0 %v751
        %v753 = vand.u32 %v472, 4294901760
        %754 = vmatmul.f32.gmra.mxu0 %v753
        %v755 = vpop.f32.mrf.mxu0
        %v756 = vadd.f32 %v710, %v755
        %757 = vdwg.mxu0
        %758 = vmatpush.msra.mxu0 0.0
        %759 = vmatpush.msra.mxu0 0.0
        %760 = vmatpush.msra.mxu0 0.0
        %761 = vmatpush.msra.mxu0 0.0
        %762 = vmatpush.msra.mxu0 0.0
        %763 = vmatpush.msra.mxu0 0.0
        %764 = vmatpush.msra.mxu0 0.0
        %765 = vmatpush.msra.mxu0 0.0
        %766 = vmatpush.msra.mxu0 0.0
        %767 = vmatpush.msra.mxu0 0.0
        %768 = vmatpush.msra.mxu0 0.0
        %v769 = vand.u32 %v479, 4294901760
        %v770 = vsub.f32 %v479, %v769
        %771 = vmatpush.msra.mxu0 %v770
        %v772 = vand.u32 %v465, 4294901760
        %v773 = vsub.f32 %v465, %v772
        %774 = vmatpush.msra.mxu0 %v773
        %v775 = vand.u32 %v462, 4294901760
        %v776 = vsub.f32 %v462, %v775
        %777 = vmatpush.msra.mxu0 %v776
        %v778 = vand.u32 %v459, 4294901760
        %v779 = vsub.f32 %v459, %v778
        %780 = vmatpush.msra.mxu0 %v779
        %v781 = vand.u32 %v456, 4294901760
        %v782 = vsub.f32 %v456, %v781
        %783 = vmatpush.msra.mxu0 %v782
        %v784 = vand.u32 %v472, 4294901760
        %v785 = vsub.f32 %v472, %v784
        %786 = vmatmul.f32.gmra.mxu0 %v785
        %v787 = vpop.f32.mrf.mxu0
        %v788 = vadd.f32 %v756, %v787
        %789 = vdwg.mxu0
        %790 = vmatpush.msra.mxu0 0.0
        %791 = vmatpush.msra.mxu0 0.0
        %792 = vmatpush.msra.mxu0 0.0
        %793 = vmatpush.msra.mxu0 0.0
        %794 = vmatpush.msra.mxu0 0.0
        %795 = vmatpush.msra.mxu0 0.0
        %796 = vmatpush.msra.mxu0 0.0
        %797 = vmatpush.msra.mxu0 0.0
        %798 = vmatpush.msra.mxu0 0.0
        %799 = vmatpush.msra.mxu0 0.0
        %800 = vmatpush.msra.mxu0 0.0
        %v801 = vand.u32 %v479, 4294901760
        %802 = vmatpush.msra.mxu0 %v801
        %v803 = vand.u32 %v465, 4294901760
        %804 = vmatpush.msra.mxu0 %v803
        %v805 = vand.u32 %v462, 4294901760
        %806 = vmatpush.msra.mxu0 %v805
        %v807 = vand.u32 %v459, 4294901760
        %808 = vmatpush.msra.mxu0 %v807
        %v809 = vand.u32 %v456, 4294901760
        %810 = vmatpush.msra.mxu0 %v809
        %v811 = vand.u32 %v472, 4294901760
        %v812 = vsub.f32 %v472, %v811
        %v813 = vand.u32 %v812, 4294901760
        %814 = vmatmul.f32.gmra.mxu0 %v813
        %v815 = vpop.f32.mrf.mxu0
        %v816 = vadd.f32 %v788, %v815
        %817 = vdwg.mxu0
        %818 = vmatpush.msra.mxu0 0.0
        %819 = vmatpush.msra.mxu0 0.0
        %820 = vmatpush.msra.mxu0 0.0
        %821 = vmatpush.msra.mxu0 0.0
        %822 = vmatpush.msra.mxu0 0.0
        %823 = vmatpush.msra.mxu0 0.0
        %824 = vmatpush.msra.mxu0 0.0
        %825 = vmatpush.msra.mxu0 0.0
        %826 = vmatpush.msra.mxu0 0.0
        %827 = vmatpush.msra.mxu0 0.0
        %828 = vmatpush.msra.mxu0 0.0
        %v829 = vand.u32 %v479, 4294901760
        %v830 = vsub.f32 %v479, %v829
        %v831 = vand.u32 %v830, 4294901760
        %832 = vmatpush.msra.mxu0 %v831
        %v833 = vand.u32 %v465, 4294901760
        %v834 = vsub.f32 %v465, %v833
        %v835 = vand.u32 %v834, 4294901760
        %836 = vmatpush.msra.mxu0 %v835
        %v837 = vand.u32 %v462, 4294901760
        %v838 = vsub.f32 %v462, %v837
        %v839 = vand.u32 %v838, 4294901760
        %840 = vmatpush.msra.mxu0 %v839
        %v841 = vand.u32 %v459, 4294901760
        %v842 = vsub.f32 %v459, %v841
        %v843 = vand.u32 %v842, 4294901760
        %844 = vmatpush.msra.mxu0 %v843
        %v845 = vand.u32 %v456, 4294901760
        %v846 = vsub.f32 %v456, %v845
        %v847 = vand.u32 %v846, 4294901760
        %848 = vmatpush.msra.mxu0 %v847
        %v849 = vand.u32 %v472, 4294901760
        %850 = vmatmul.f32.gmra.mxu0 %v849
        %v851 = vpop.f32.mrf.mxu0
        %v852 = vadd.f32 %v816, %v851
        %853 = vdwg.mxu0
        %854 = vmatpush.msra.mxu0 0.0
        %855 = vmatpush.msra.mxu0 0.0
        %856 = vmatpush.msra.mxu0 0.0
        %857 = vmatpush.msra.mxu0 0.0
        %858 = vmatpush.msra.mxu0 0.0
        %859 = vmatpush.msra.mxu0 0.0
        %860 = vmatpush.msra.mxu0 0.0
        %861 = vmatpush.msra.mxu0 0.0
        %862 = vmatpush.msra.mxu0 0.0
        %863 = vmatpush.msra.mxu0 0.0
        %864 = vmatpush.msra.mxu0 0.0
        %v865 = vand.u32 %v479, 4294901760
        %866 = vmatpush.msra.mxu0 %v865
        %v867 = vand.u32 %v465, 4294901760
        %868 = vmatpush.msra.mxu0 %v867
        %v869 = vand.u32 %v462, 4294901760
        %870 = vmatpush.msra.mxu0 %v869
        %v871 = vand.u32 %v459, 4294901760
        %872 = vmatpush.msra.mxu0 %v871
        %v873 = vand.u32 %v456, 4294901760
        %874 = vmatpush.msra.mxu0 %v873
        %v875 = vand.u32 %v472, 4294901760
        %876 = vmatmul.f32.gmra.mxu0 %v875
        %v877 = vpop.f32.mrf.mxu0
        %v878 = vadd.f32 %v852, %v877
        %879 = vdwg.mxu0
        %880 = vmatpush.msra.mxu0 0.0
        %881 = vmatpush.msra.mxu0 0.0
        %882 = vmatpush.msra.mxu0 0.0
        %883 = vmatpush.msra.mxu0 0.0
        %884 = vmatpush.msra.mxu0 0.0
        %885 = vmatpush.msra.mxu0 0.0
        %886 = vmatpush.msra.mxu0 0.0
        %887 = vmatpush.msra.mxu0 0.0
        %888 = vmatpush.msra.mxu0 0.0
        %889 = vmatpush.msra.mxu0 0.0
        %890 = vmatpush.msra.mxu0 0.0
        %v891 = vand.u32 %v482, 4294901760
        %892 = vmatpush.msra.mxu0 %v891
        %v893 = vand.u32 %v466, 4294901760
        %894 = vmatpush.msra.mxu0 %v893
        %v895 = vand.u32 %v463, 4294901760
        %896 = vmatpush.msra.mxu0 %v895
        %v897 = vand.u32 %v460, 4294901760
        %898 = vmatpush.msra.mxu0 %v897
        %v899 = vand.u32 %v457, 4294901760
        %900 = vmatpush.msra.mxu0 %v899
        %v901 = vand.u32 %v472, 4294901760
        %v902 = vsub.f32 %v472, %v901
        %v903 = vand.u32 %v902, 4294901760
        %v904 = vsub.f32 %v902, %v903
        %v905 = vand.u32 %v904, 4294901760
        %906 = vmatmul.f32.gmra.mxu0 %v905
        %v907 = vpop.f32.mrf.mxu0
        %v908 = vadd.f32 0.0, %v907
        %909 = vdwg.mxu0
        %910 = vmatpush.msra.mxu0 0.0
        %911 = vmatpush.msra.mxu0 0.0
        %912 = vmatpush.msra.mxu0 0.0
        %913 = vmatpush.msra.mxu0 0.0
        %914 = vmatpush.msra.mxu0 0.0
        %915 = vmatpush.msra.mxu0 0.0
        %916 = vmatpush.msra.mxu0 0.0
        %917 = vmatpush.msra.mxu0 0.0
        %918 = vmatpush.msra.mxu0 0.0
        %919 = vmatpush.msra.mxu0 0.0
        %920 = vmatpush.msra.mxu0 0.0
        %v921 = vand.u32 %v482, 4294901760
        %v922 = vsub.f32 %v482, %v921
        %v923 = vand.u32 %v922, 4294901760
        %v924 = vsub.f32 %v922, %v923
        %v925 = vand.u32 %v924, 4294901760
        %926 = vmatpush.msra.mxu0 %v925
        %v927 = vand.u32 %v466, 4294901760
        %v928 = vsub.f32 %v466, %v927
        %v929 = vand.u32 %v928, 4294901760
        %v930 = vsub.f32 %v928, %v929
        %v931 = vand.u32 %v930, 4294901760
        %932 = vmatpush.msra.mxu0 %v931
        %v933 = vand.u32 %v463, 4294901760
        %v934 = vsub.f32 %v463, %v933
        %v935 = vand.u32 %v934, 4294901760
        %v936 = vsub.f32 %v934, %v935
        %v937 = vand.u32 %v936, 4294901760
        %938 = vmatpush.msra.mxu0 %v937
        %v939 = vand.u32 %v460, 4294901760
        %v940 = vsub.f32 %v460, %v939
        %v941 = vand.u32 %v940, 4294901760
        %v942 = vsub.f32 %v940, %v941
        %v943 = vand.u32 %v942, 4294901760
        %944 = vmatpush.msra.mxu0 %v943
        %v945 = vand.u32 %v457, 4294901760
        %v946 = vsub.f32 %v457, %v945
        %v947 = vand.u32 %v946, 4294901760
        %v948 = vsub.f32 %v946, %v947
        %v949 = vand.u32 %v948, 4294901760
        %950 = vmatpush.msra.mxu0 %v949
        %v951 = vand.u32 %v472, 4294901760
        %952 = vmatmul.f32.gmra.mxu0 %v951
        %v953 = vpop.f32.mrf.mxu0
        %v954 = vadd.f32 %v908, %v953
        %955 = vdwg.mxu0
        %956 = vmatpush.msra.mxu0 0.0
        %957 = vmatpush.msra.mxu0 0.0
        %958 = vmatpush.msra.mxu0 0.0
        %959 = vmatpush.msra.mxu0 0.0
        %960 = vmatpush.msra.mxu0 0.0
        %961 = vmatpush.msra.mxu0 0.0
        %962 = vmatpush.msra.mxu0 0.0
        %963 = vmatpush.msra.mxu0 0.0
        %964 = vmatpush.msra.mxu0 0.0
        %965 = vmatpush.msra.mxu0 0.0
        %966 = vmatpush.msra.mxu0 0.0
        %v967 = vand.u32 %v482, 4294901760
        %v968 = vsub.f32 %v482, %v967
        %969 = vmatpush.msra.mxu0 %v968
        %v970 = vand.u32 %v466, 4294901760
        %v971 = vsub.f32 %v466, %v970
        %972 = vmatpush.msra.mxu0 %v971
        %v973 = vand.u32 %v463, 4294901760
        %v974 = vsub.f32 %v463, %v973
        %975 = vmatpush.msra.mxu0 %v974
        %v976 = vand.u32 %v460, 4294901760
        %v977 = vsub.f32 %v460, %v976
        %978 = vmatpush.msra.mxu0 %v977
        %v979 = vand.u32 %v457, 4294901760
        %v980 = vsub.f32 %v457, %v979
        %981 = vmatpush.msra.mxu0 %v980
        %v982 = vand.u32 %v472, 4294901760
        %v983 = vsub.f32 %v472, %v982
        %984 = vmatmul.f32.gmra.mxu0 %v983
        %v985 = vpop.f32.mrf.mxu0
        %v986 = vadd.f32 %v954, %v985
        %987 = vdwg.mxu0
        %988 = vmatpush.msra.mxu0 0.0
        %989 = vmatpush.msra.mxu0 0.0
        %990 = vmatpush.msra.mxu0 0.0
        %991 = vmatpush.msra.mxu0 0.0
        %992 = vmatpush.msra.mxu0 0.0
        %993 = vmatpush.msra.mxu0 0.0
        %994 = vmatpush.msra.mxu0 0.0
        %995 = vmatpush.msra.mxu0 0.0
        %996 = vmatpush.msra.mxu0 0.0
        %997 = vmatpush.msra.mxu0 0.0
        %998 = vmatpush.msra.mxu0 0.0
        %v999 = vand.u32 %v482, 4294901760
        %1000 = vmatpush.msra.mxu0 %v999
        %v1001 = vand.u32 %v466, 4294901760
        %1002 = vmatpush.msra.mxu0 %v1001
        %v1003 = vand.u32 %v463, 4294901760
        %1004 = vmatpush.msra.mxu0 %v1003
        %v1005 = vand.u32 %v460, 4294901760
        %1006 = vmatpush.msra.mxu0 %v1005
        %v1007 = vand.u32 %v457, 4294901760
        %1008 = vmatpush.msra.mxu0 %v1007
        %v1009 = vand.u32 %v472, 4294901760
        %v1010 = vsub.f32 %v472, %v1009
        %v1011 = vand.u32 %v1010, 4294901760
        %1012 = vmatmul.f32.gmra.mxu0 %v1011
        %v1013 = vpop.f32.mrf.mxu0
        %v1014 = vadd.f32 %v986, %v1013
        %1015 = vdwg.mxu0
        %1016 = vmatpush.msra.mxu0 0.0
        %1017 = vmatpush.msra.mxu0 0.0
        %1018 = vmatpush.msra.mxu0 0.0
        %1019 = vmatpush.msra.mxu0 0.0
        %1020 = vmatpush.msra.mxu0 0.0
        %1021 = vmatpush.msra.mxu0 0.0
        %1022 = vmatpush.msra.mxu0 0.0
        %1023 = vmatpush.msra.mxu0 0.0
        %1024 = vmatpush.msra.mxu0 0.0
        %1025 = vmatpush.msra.mxu0 0.0
        %1026 = vmatpush.msra.mxu0 0.0
        %v1027 = vand.u32 %v482, 4294901760
        %v1028 = vsub.f32 %v482, %v1027
        %v1029 = vand.u32 %v1028, 4294901760
        %1030 = vmatpush.msra.mxu0 %v1029
        %v1031 = vand.u32 %v466, 4294901760
        %v1032 = vsub.f32 %v466, %v1031
        %v1033 = vand.u32 %v1032, 4294901760
        %1034 = vmatpush.msra.mxu0 %v1033
        %v1035 = vand.u32 %v463, 4294901760
        %v1036 = vsub.f32 %v463, %v1035
        %v1037 = vand.u32 %v1036, 4294901760
        %1038 = vmatpush.msra.mxu0 %v1037
        %v1039 = vand.u32 %v460, 4294901760
        %v1040 = vsub.f32 %v460, %v1039
        %v1041 = vand.u32 %v1040, 4294901760
        %1042 = vmatpush.msra.mxu0 %v1041
        %v1043 = vand.u32 %v457, 4294901760
        %v1044 = vsub.f32 %v457, %v1043
        %v1045 = vand.u32 %v1044, 4294901760
        %1046 = vmatpush.msra.mxu0 %v1045
        %v1047 = vand.u32 %v472, 4294901760
        %1048 = vmatmul.f32.gmra.mxu0 %v1047
        %v1049 = vpop.f32.mrf.mxu0
        %v1050 = vadd.f32 %v1014, %v1049
        %1051 = vdwg.mxu0
        %1052 = vmatpush.msra.mxu0 0.0
        %1053 = vmatpush.msra.mxu0 0.0
        %1054 = vmatpush.msra.mxu0 0.0
        %1055 = vmatpush.msra.mxu0 0.0
        %1056 = vmatpush.msra.mxu0 0.0
        %1057 = vmatpush.msra.mxu0 0.0
        %1058 = vmatpush.msra.mxu0 0.0
        %1059 = vmatpush.msra.mxu0 0.0
        %1060 = vmatpush.msra.mxu0 0.0
        %1061 = vmatpush.msra.mxu0 0.0
        %1062 = vmatpush.msra.mxu0 0.0
        %v1063 = vand.u32 %v482, 4294901760
        %1064 = vmatpush.msra.mxu0 %v1063
        %v1065 = vand.u32 %v466, 4294901760
        %1066 = vmatpush.msra.mxu0 %v1065
        %v1067 = vand.u32 %v463, 4294901760
        %1068 = vmatpush.msra.mxu0 %v1067
        %v1069 = vand.u32 %v460, 4294901760
        %1070 = vmatpush.msra.mxu0 %v1069
        %v1071 = vand.u32 %v457, 4294901760
        %1072 = vmatpush.msra.mxu0 %v1071
        %v1073 = vand.u32 %v472, 4294901760
        %1074 = vmatmul.f32.gmra.mxu0 %v1073
        %v1075 = vpop.f32.mrf.mxu0
        %v1076 = vadd.f32 %v1050, %v1075
        %1077 = vdwg.mxu0
        %v1078 = vsel %vm261, 1, 0
        %v1079 = vperm.slane %v1078, 0
        %v1080 = vperm.slane %v1078, 1
        %v1081 = vperm.slane %v1078, 2
        %vm1082 = vcmp.eq.s32.totalorder %v1079, 1
        %vm1083 = vcmp.eq.s32.totalorder %v1080, 1
        %vm1084 = vcmp.eq.s32.totalorder %v1081, 1
        %v1085 = vsel %vm1082, %v680, 0.0
        %v1086 = vsel %vm1083, %v878, 0.0
        %v1087 = vsel %vm1084, %v1076, 0.0
        %v1088 = vsel %vm474, %v1085, 0.0
        %v1089 = vsel %vm474, %v1086, 0.0
        %v1090 = vadd.f32 %v1088, %v1089
        %v1091 = vsel %vm280, %v1087, 0.0
        %v1092 = vadd.f32 %v1090, %v1091
        %1093 = vadd.xlane.f32.xlu0 %v1092
        %v1094 = vpop.xlane.xlu0 %1093
        %v1095 = vmul.f32 %v1085, %v1085
        %v1096 = vmul.f32 %v1086, %v1086
        %v1097 = vmul.f32 %v1087, %v1087
        %v1098 = vsel %vm474, %v1095, 0.0
        %v1099 = vsel %vm474, %v1096, 0.0
        %v1100 = vadd.f32 %v1098, %v1099
        %v1101 = vsel %vm280, %v1097, 0.0
        %v1102 = vadd.f32 %v1100, %v1101
        %1103 = vadd.xlane.f32.xlu0 %v1102
        %v1104 = vpop.xlane.xlu0 %1103
        %v1105 = vmul.f32 %v1094, 0.00390625
        %v1106 = vmul.f32 %v1104, 0.00390625
        %v1107 = vmul.f32 %v1105, %v1105
        %v1108 = vsub.f32 %v1106, %v1107
        %v1109 = vsub.f32 %v680, %v1105
        %v1110 = vsub.f32 %v878, %v1105
        %v1111 = vsub.f32 %v1076, %v1105
        %v1112 = vadd.f32 %v1108, 1e-05
        %v1113 = vrsqrt.pop %v1112
        %v1114 = vmul.f32 %v1113, %v1112
        %v1115 = vmul.f32 %v1114, %v1113
        %v1116 = vmul.f32 0.5, %v1115
        %v1117 = vsub.f32 1.5, %v1116
        %v1118 = vmul.f32 %v1113, %v1117
        %vm1119 = vweird.f32 %v1112
        %vm1120 = vweird.f32 %v1113
        %vm1121 = vmor %vm1119, %vm1120
        %v1122 = vsel %vm1121, %v1113, %v1118
        %v1123 = vmul.f32 %v1109, %v1122
        %v1124 = vmul.f32 %v1110, %v1122
        %v1125 = vmul.f32 %v1111, %v1122
        %v1126 = vmax.f32 %v1123, 0.0
        %v1127 = vmax.f32 %v1124, 0.0
        %v1128 = vmax.f32 %v1125, 0.0
        %vm1129 = vcmask 27648
        %1130 = vst.msk [vmem:[#allocation3] sm:$0xf] %vm1129, 0.0
        %vm1131 = vcmask 322848
        %1132 = vst.msk [vmem:[#allocation3 + $0x8] sm:$0xf] %vm1131, 0.0
        %v1136 = vrot.slane %v1127, 4
        %v1137 = vsel %vm474, %v1126, %v1136
        %1138 = vrot.lane.b32.xlu0 %v1137, 4
        %v1139 = vpop.permute.xlu0 %1138
        %1140 = vrot.lane.b32.xlu0 %v1128, 4
        %v1141 = vpop.permute.xlu0 %1140
        %v1142 = vrot.slane %v1139, 4
        %vm1143 = vcmask 31744
        %v1144 = vsel %vm1143, %v1142, %v1139
        %v1145 = vsel %vm1143, %v1142, %v1141
        %vm1148 = vcmask 1043488
        %vm1149 = vcmask 1047556
        %vm1150 = vmor %vm1149, %vm1148
        %1151 = vst.msk [vmem:[#allocation3] sm:$0xff] %vm1150, %v1144
        %vm1152 = vcmask 289792
        %1153 = vst.msk [vmem:[#allocation3 + $0x8] sm:$0xf] %vm1152, %v1145
        %v1154 = vld [vmem:[#allocation3] sm:$0xff]
        %v1155 = vld [vmem:[#allocation3 + $0x8] sm:$0xf]
        %v1156 = vsel %vm263, 1, 0
        %v1157 = vperm.slane %v1156, 0
        %v1158 = vperm.slane %v1156, 1
        %v1159 = vperm.slane %v1156, 2
        %vm1160 = vcmp.eq.s32.totalorder %v1157, 1
        %vm1161 = vcmp.eq.s32.totalorder %v1158, 1
        %vm1162 = vcmp.eq.s32.totalorder %v1159, 1
        %1165 = vst [vmem:[#allocation1] ss:$2 sm:$0xff] %v1154
        %s1166 = scalar_lea.vmem [#allocation1], 16
        %1167 = vst [vmem:[%s1166] ss:$2 sm:$0xff] %v1155
        %v1168 = vld.sshfl [vmem:[#allocation1] sm:$0xff pattern:$0x75316420]
        %v1169 = vld.sshfl [vmem:[#allocation1 + $0x8] sm:$0xff pattern:$0x75316420]
        %v1170 = vld.sshfl [vmem:[#allocation1 + $0x10] sm:$0xff pattern:$0x75316420]
        %1171 = vrot.lane.b32.xlu0 %v1168, 127
        %v1172 = vpop.permute.xlu0 %1171
        %1173 = vrot.lane.b32.xlu0 %v1169, 127
        %v1174 = vpop.permute.xlu0 %1173
        %1175 = vrot.lane.b32.xlu0 %v1170, 127
        %v1176 = vpop.permute.xlu0 %1175
        %v1177 = vsel %vm295, %v1172, %v1174
        %v1178 = vsel %vm295, %v1174, %v1176
        %1182 = vst [vmem:[#allocation1] ss:$2 sm:$0xff] %v1154
        %s1183 = scalar_lea.vmem [#allocation1], 16
        %1184 = vst [vmem:[%s1183] ss:$2 sm:$0xff] %v1155
        %v1185 = vld.sshfl [vmem:[#allocation1] sm:$0xff pattern:$0x75316420]
        %v1186 = vld.sshfl [vmem:[#allocation1 + $0x8] sm:$0xff pattern:$0x75316420]
        %v1187 = vld.sshfl [vmem:[#allocation1 + $0x10] sm:$0xff pattern:$0x75316420]
        %1188 = vrot.lane.b32.xlu0 %v1185, 125
        %v1189 = vpop.permute.xlu0 %1188
        %1190 = vrot.lane.b32.xlu0 %v1186, 125
        %v1191 = vpop.permute.xlu0 %1190
        %1192 = vrot.lane.b32.xlu0 %v1187, 125
        %v1193 = vpop.permute.xlu0 %1192
        %vm1194 = vcmask 1022976
        %v1195 = vsel %vm1194, %v1189, %v1191
        %v1196 = vsel %vm1194, %v1191, %v1193
        %v1200 = vsel %vm1160, %v1177, %v1195
        %v1201 = vsel %vm1161, %v1178, %v1196
        %v1202 = vsel %vm1162, %v1176, %v1193
        %v1203 = vsel %vm262, 1, 0
        %v1204 = vperm.slane %v1203, 0
        %v1205 = vperm.slane %v1203, 1
        %v1206 = vperm.slane %v1203, 2
        %vm1207 = vcmp.eq.s32.totalorder %v1204, 1
        %vm1208 = vcmp.eq.s32.totalorder %v1205, 1
        %vm1209 = vcmp.eq.s32.totalorder %v1206, 1
        %1210 = vst [vmem:[#allocation1] ss:$2 sm:$0xff] %v1154
        %s1211 = scalar_lea.vmem [#allocation1], 16
        %1212 = vst [vmem:[%s1211] ss:$2 sm:$0xff] %v1155
        %v1213 = vld.sshfl [vmem:[#allocation1] sm:$0xff pattern:$0x75316420]
        %v1214 = vld.sshfl [vmem:[#allocation1 + $0x8] sm:$0xff pattern:$0x75316420]
        %v1215 = vld.sshfl [vmem:[#allocation1 + $0x10] sm:$0xff pattern:$0x75316420]
        %1216 = vrot.lane.b32.xlu0 %v1213, 123
        %v1217 = vpop.permute.xlu0 %1216
        %1218 = vrot.lane.b32.xlu0 %v1214, 123
        %v1219 = vpop.permute.xlu0 %1218
        %1220 = vrot.lane.b32.xlu0 %v1215, 123
        %v1221 = vpop.permute.xlu0 %1220
        %vm1222 = vcmask 1006592
        %v1223 = vsel %vm1222, %v1217, %v1219
        %v1224 = vsel %vm1222, %v1219, %v1221
        %v1228 = vsel %vm1207, %v1223, %v1200
        %v1229 = vsel %vm1208, %v1224, %v1201
        %v1230 = vsel %vm1209, %v1221, %v1202
        %1232 = vrot.lane.b32.xlu0 %v1228, 110
        %v1233 = vpop.permute.xlu0 %1232
        %vm1235 = vcmask 142336
        %1236 = vst.msk [vmem:[#allocation2] sm:$0xf] %vm1235, %v1233
        %v1239 = vrot.slane %v1229, 4
        %v1240 = vsel %vm474, %v1228, %v1239
        %1241 = vrot.lane.b32.xlu0 %v1240, 18
        %v1242 = vpop.permute.xlu0 %1241
        %1243 = vrot.lane.b32.xlu0 %v1230, 18
        %v1244 = vpop.permute.xlu0 %1243
        %v1245 = vrot.slane %v1242, 4
        %vm1246 = vcmask 146432
        %v1247 = vsel %vm1246, %v1245, %v1242
        %v1248 = vsel %vm1246, %v1245, %v1244
        %vm1251 = vcmask 1043600
        %vm1252 = vmor %vm1149, %vm1251
        %1253 = vst.msk [vmem:[#allocation2] sm:$0xff] %vm1252, %v1247
        %vm1254 = vcmask 404480
        %1255 = vst.msk [vmem:[#allocation2 + $0x8] sm:$0xf] %vm1254, %v1248
        %v1256 = vrot.slane %v1230, 4
        %v1257 = vsel %vm474, %v1229, %v1256
        %1258 = vrot.lane.b32.xlu0 %v1257, 54
        %v1259 = vpop.permute.xlu0 %1258
        %v1260 = vrot.slane %v1259, 4
        %vm1261 = vcmask 441344
        %v1262 = vsel %vm1261, %v1259, %v1260
        %vm1264 = vcmask 552336
        %1265 = vst.msk [vmem:[#allocation2 + $0x8] sm:$0xf] %vm1264, %v1262
        %vm1266 = vcmask 568864
        %1267 = vst.msk [vmem:[#allocation2 + $0x8] sm:$0xf] %vm1266, 0.0
        %v1268 = vld [vmem:[#allocation11] sm:$0xf]
        %v1269 = vld [vmem:[#allocation2] sm:$0xff]
        %v1270 = vld [vmem:[#allocation2 + $0x8] sm:$0xf]
        %1273 = vst [vmem:[#allocation1] ss:$2 sm:$0xff] %v1269
        %s1274 = scalar_lea.vmem [#allocation1], 16
        %1275 = vst [vmem:[%s1274] ss:$2 sm:$0xff] %v1270
        %v1276 = vld.sshfl [vmem:[#allocation1] sm:$0xff pattern:$0x75316420]
        %v1277 = vld.sshfl [vmem:[#allocation1 + $0x8] sm:$0xff pattern:$0x75316420]
        %v1278 = vld.sshfl [vmem:[#allocation1 + $0x10] sm:$0xff pattern:$0x75316420]
        %1282 = vst [vmem:[#allocation4] sm:$0xf] %v1276
        %1283 = vst [vmem:[#allocation4 + $0x8] sm:$0xf] %v1277
        %1284 = vst.msk [vmem:[#allocation4 + $0x10] sm:$0xf] %vm280, %v1278
        %v1285 = vld [vmem:[#allocation2] sm:$0xff]
        %v1286 = vld [vmem:[#allocation2 + $0x8] sm:$0xf]
        %s1289 = scalar_lea.vmem [#allocation1], 1
        %1290 = vst [vmem:[%s1289] ss:$2 sm:$0xff] %v1285
        %s1291 = scalar_lea.vmem [#allocation1], 17
        %1292 = vst [vmem:[%s1291] ss:$2 sm:$0xff] %v1286
        %v1293 = vld.sshfl [vmem:[#allocation1] sm:$0xff pattern:$0x75316420]
        %v1294 = vld.sshfl [vmem:[#allocation1 + $0x8] sm:$0xff pattern:$0x75316420]
        %v1295 = vld.sshfl [vmem:[#allocation1 + $0x10] sm:$0xff pattern:$0x75316420]
        %1296 = vrot.lane.b32.xlu0 %v1293, 127
        %v1297 = vpop.permute.xlu0 %1296
        %1298 = vrot.lane.b32.xlu0 %v1294, 127
        %v1299 = vpop.permute.xlu0 %1298
        %1300 = vrot.lane.b32.xlu0 %v1295, 127
        %v1301 = vpop.permute.xlu0 %1300
        %v1302 = vsel %vm295, %v1297, %v1299
        %v1303 = vsel %vm295, %v1299, %v1301
        %1307 = vst [vmem:[#allocation4] sm:$0xf0] %v1302
        %1308 = vst [vmem:[#allocation4 + $0x8] sm:$0xf0] %v1303
        %1309 = vst.msk [vmem:[#allocation4 + $0x10] sm:$0xf0] %vm303, %v1301
        %v1310 = vld [vmem:[#allocation2] sm:$0xff]
        %v1311 = vld [vmem:[#allocation2 + $0x8] sm:$0xf]
        %1314 = vst [vmem:[#allocation1] ss:$2 sm:$0xff] %v1310
        %s1315 = scalar_lea.vmem [#allocation1], 16
        %1316 = vst [vmem:[%s1315] ss:$2 sm:$0xff] %v1311
        %v1317 = vld.sshfl [vmem:[#allocation1] sm:$0xff pattern:$0x75316420]
        %v1318 = vld.sshfl [vmem:[#allocation1 + $0x8] sm:$0xff pattern:$0x75316420]
        %v1319 = vld.sshfl [vmem:[#allocation1 + $0x10] sm:$0xff pattern:$0x75316420]
        %1320 = vrot.lane.b32.xlu0 %v1317, 126
        %v1321 = vpop.permute.xlu0 %1320
        %1322 = vrot.lane.b32.xlu0 %v1318, 126
        %v1323 = vpop.permute.xlu0 %1322
        %1324 = vrot.lane.b32.xlu0 %v1319, 126
        %v1325 = vpop.permute.xlu0 %1324
        %v1326 = vsel %vm317, %v1321, %v1323
        %v1327 = vsel %vm317, %v1323, %v1325
        %1331 = vst [vmem:[#allocation4 + $0x18] sm:$0xf] %v1326
        %1332 = vst [vmem:[#allocation4 + $0x20] sm:$0xf] %v1327
        %1333 = vst.msk [vmem:[#allocation4 + $0x28] sm:$0xf] %vm280, %v1325
        %v1334 = vld [vmem:[#allocation2] sm:$0xff]
        %v1335 = vld [vmem:[#allocation2 + $0x8] sm:$0xf]
        %s1338 = scalar_lea.vmem [#allocation1], 1
        %1339 = vst [vmem:[%s1338] ss:$2 sm:$0xff] %v1334
        %s1340 = scalar_lea.vmem [#allocation1], 17
        %1341 = vst [vmem:[%s1340] ss:$2 sm:$0xff] %v1335
        %v1342 = vld.sshfl [vmem:[#allocation1] sm:$0xff pattern:$0x75316420]
        %v1343 = vld.sshfl [vmem:[#allocation1 + $0x8] sm:$0xff pattern:$0x75316420]
        %v1344 = vld.sshfl [vmem:[#allocation1 + $0x10] sm:$0xff pattern:$0x75316420]
        %1345 = vrot.lane.b32.xlu0 %v1342, 110
        %v1346 = vpop.permute.xlu0 %1345
        %1347 = vrot.lane.b32.xlu0 %v1343, 110
        %v1348 = vpop.permute.xlu0 %1347
        %1349 = vrot.lane.b32.xlu0 %v1344, 110
        %v1350 = vpop.permute.xlu0 %1349
        %v1351 = vsel %vm339, %v1346, %v1348
        %v1352 = vsel %vm339, %v1348, %v1350
        %1356 = vst [vmem:[#allocation4 + $0x18] sm:$0xf0] %v1351
        %1357 = vst [vmem:[#allocation4 + $0x20] sm:$0xf0] %v1352
        %1358 = vst.msk [vmem:[#allocation4 + $0x28] sm:$0xf0] %vm303, %v1350
        %v1359 = vld [vmem:[#allocation2] sm:$0xff]
        %v1360 = vld [vmem:[#allocation2 + $0x8] sm:$0xf]
        %1363 = vst [vmem:[#allocation1] ss:$2 sm:$0xff] %v1359
        %s1364 = scalar_lea.vmem [#allocation1], 16
        %1365 = vst [vmem:[%s1364] ss:$2 sm:$0xff] %v1360
        %v1366 = vld.sshfl [vmem:[#allocation1] sm:$0xff pattern:$0x75316420]
        %v1367 = vld.sshfl [vmem:[#allocation1 + $0x8] sm:$0xff pattern:$0x75316420]
        %v1368 = vld.sshfl [vmem:[#allocation1 + $0x10] sm:$0xff pattern:$0x75316420]
        %1369 = vrot.lane.b32.xlu0 %v1366, 109
        %v1370 = vpop.permute.xlu0 %1369
        %1371 = vrot.lane.b32.xlu0 %v1367, 109
        %v1372 = vpop.permute.xlu0 %1371
        %1373 = vrot.lane.b32.xlu0 %v1368, 109
        %v1374 = vpop.permute.xlu0 %1373
        %v1375 = vsel %vm360, %v1370, %v1372
        %v1376 = vsel %vm360, %v1372, %v1374
        %1380 = vst [vmem:[#allocation4 + $0x30] sm:$0xf] %v1375
        %1381 = vst [vmem:[#allocation4 + $0x38] sm:$0xf] %v1376
        %1382 = vst.msk [vmem:[#allocation4 + $0x40] sm:$0xf] %vm280, %v1374
        %v1383 = vld [vmem:[#allocation2] sm:$0xff]
        %v1384 = vld [vmem:[#allocation2 + $0x8] sm:$0xf]
        %s1387 = scalar_lea.vmem [#allocation1], 1
        %1388 = vst [vmem:[%s1387] ss:$2 sm:$0xff] %v1383
        %s1389 = scalar_lea.vmem [#allocation1], 17
        %1390 = vst [vmem:[%s1389] ss:$2 sm:$0xff] %v1384
        %v1391 = vld.sshfl [vmem:[#allocation1] sm:$0xff pattern:$0x75316420]
        %v1392 = vld.sshfl [vmem:[#allocation1 + $0x8] sm:$0xff pattern:$0x75316420]
        %v1393 = vld.sshfl [vmem:[#allocation1 + $0x10] sm:$0xff pattern:$0x75316420]
        %1394 = vrot.lane.b32.xlu0 %v1391, 108
        %v1395 = vpop.permute.xlu0 %1394
        %1396 = vrot.lane.b32.xlu0 %v1392, 108
        %v1397 = vpop.permute.xlu0 %1396
        %1398 = vrot.lane.b32.xlu0 %v1393, 108
        %v1399 = vpop.permute.xlu0 %1398
        %v1400 = vsel %vm382, %v1395, %v1397
        %v1401 = vsel %vm382, %v1397, %v1399
        %1405 = vst [vmem:[#allocation4 + $0x30] sm:$0xf0] %v1400
        %1406 = vst [vmem:[#allocation4 + $0x38] sm:$0xf0] %v1401
        %1407 = vst.msk [vmem:[#allocation4 + $0x40] sm:$0xf0] %vm303, %v1399
        %v1408 = vld [vmem:[#allocation2] sm:$0xff]
        %v1409 = vld [vmem:[#allocation2 + $0x8] sm:$0xf]
        %1412 = vst [vmem:[#allocation1] ss:$2 sm:$0xff] %v1408
        %s1413 = scalar_lea.vmem [#allocation1], 16
        %1414 = vst [vmem:[%s1413] ss:$2 sm:$0xff] %v1409
        %v1415 = vld.sshfl [vmem:[#allocation1] sm:$0xff pattern:$0x75316420]
        %v1416 = vld.sshfl [vmem:[#allocation1 + $0x8] sm:$0xff pattern:$0x75316420]
        %v1417 = vld.sshfl [vmem:[#allocation1 + $0x10] sm:$0xff pattern:$0x75316420]
        %1418 = vrot.lane.b32.xlu0 %v1415, 92
        %v1419 = vpop.permute.xlu0 %1418
        %1420 = vrot.lane.b32.xlu0 %v1416, 92
        %v1421 = vpop.permute.xlu0 %1420
        %1422 = vrot.lane.b32.xlu0 %v1417, 92
        %v1423 = vpop.permute.xlu0 %1422
        %v1424 = vsel %vm403, %v1419, %v1421
        %v1425 = vsel %vm403, %v1421, %v1423
        %1429 = vst [vmem:[#allocation4 + $0x48] sm:$0xf] %v1424
        %1430 = vst [vmem:[#allocation4 + $0x50] sm:$0xf] %v1425
        %1431 = vst.msk [vmem:[#allocation4 + $0x58] sm:$0xf] %vm280, %v1423
        %v1432 = vld [vmem:[#allocation2] sm:$0xff]
        %v1433 = vld [vmem:[#allocation2 + $0x8] sm:$0xf]
        %s1436 = scalar_lea.vmem [#allocation1], 1
        %1437 = vst [vmem:[%s1436] ss:$2 sm:$0xff] %v1432
        %s1438 = scalar_lea.vmem [#allocation1], 17
        %1439 = vst [vmem:[%s1438] ss:$2 sm:$0xff] %v1433
        %v1440 = vld.sshfl [vmem:[#allocation1] sm:$0xff pattern:$0x75316420]
        %v1441 = vld.sshfl [vmem:[#allocation1 + $0x8] sm:$0xff pattern:$0x75316420]
        %v1442 = vld.sshfl [vmem:[#allocation1 + $0x10] sm:$0xff pattern:$0x75316420]
        %1443 = vrot.lane.b32.xlu0 %v1440, 91
        %v1444 = vpop.permute.xlu0 %1443
        %1445 = vrot.lane.b32.xlu0 %v1441, 91
        %v1446 = vpop.permute.xlu0 %1445
        %1447 = vrot.lane.b32.xlu0 %v1442, 91
        %v1448 = vpop.permute.xlu0 %1447
        %v1449 = vsel %vm425, %v1444, %v1446
        %v1450 = vsel %vm425, %v1446, %v1448
        %1454 = vst [vmem:[#allocation4 + $0x48] sm:$0xf0] %v1449
        %1455 = vst [vmem:[#allocation4 + $0x50] sm:$0xf0] %v1450
        %1456 = vst.msk [vmem:[#allocation4 + $0x58] sm:$0xf0] %vm303, %v1448
        %v1457 = vld [vmem:[#allocation2] sm:$0xff]
        %v1458 = vld [vmem:[#allocation2 + $0x8] sm:$0xf]
        %1461 = vst [vmem:[#allocation1] ss:$2 sm:$0xff] %v1457
        %s1462 = scalar_lea.vmem [#allocation1], 16
        %1463 = vst [vmem:[%s1462] ss:$2 sm:$0xff] %v1458
        %v1464 = vld.sshfl [vmem:[#allocation1] sm:$0xff pattern:$0x75316420]
        %v1465 = vld.sshfl [vmem:[#allocation1 + $0x8] sm:$0xff pattern:$0x75316420]
        %v1466 = vld.sshfl [vmem:[#allocation1 + $0x10] sm:$0xff pattern:$0x75316420]
        %1467 = vrot.lane.b32.xlu0 %v1464, 90
        %v1468 = vpop.permute.xlu0 %1467
        %1469 = vrot.lane.b32.xlu0 %v1465, 90
        %v1470 = vpop.permute.xlu0 %1469
        %1471 = vrot.lane.b32.xlu0 %v1466, 90
        %v1472 = vpop.permute.xlu0 %1471
        %v1473 = vsel %vm446, %v1468, %v1470
        %v1474 = vsel %vm446, %v1470, %v1472
        %1478 = vst [vmem:[#allocation4 + $0x60] sm:$0xf] %v1473
        %1479 = vst [vmem:[#allocation4 + $0x68] sm:$0xf] %v1474
        %1480 = vst.msk [vmem:[#allocation4 + $0x70] sm:$0xf] %vm280, %v1472
        %v1481 = vld [vmem:[#allocation4] sm:$0xff]
        %v1482 = vld [vmem:[#allocation4 + $0x8] sm:$0xff]
        %v1483 = vld [vmem:[#allocation4 + $0x10] sm:$0xff]
        %v1484 = vld [vmem:[#allocation4 + $0x18] sm:$0xff]
        %v1485 = vld [vmem:[#allocation4 + $0x20] sm:$0xff]
        %v1486 = vld [vmem:[#allocation4 + $0x28] sm:$0xff]
        %v1487 = vld [vmem:[#allocation4 + $0x30] sm:$0xff]
        %v1488 = vld [vmem:[#allocation4 + $0x38] sm:$0xff]
        %v1489 = vld [vmem:[#allocation4 + $0x40] sm:$0xff]
        %v1490 = vld [vmem:[#allocation4 + $0x48] sm:$0xff]
        %v1491 = vld [vmem:[#allocation4 + $0x50] sm:$0xff]
        %v1492 = vld [vmem:[#allocation4 + $0x58] sm:$0xff]
        %v1493 = vld [vmem:[#allocation4 + $0x60] sm:$0xf]
        %v1494 = vld [vmem:[#allocation4 + $0x68] sm:$0xf]
        %v1495 = vld [vmem:[#allocation4 + $0x70] sm:$0xf]
        %v1497 = vsel %vm470, %v1268, 0
        %v1500 = vsel %vm474, %v1493, 0
        %v1503 = vsel %vm474, %v1494, 0
        %v1506 = vsel %vm474, %v1495, 0
        %1508 = vmatpush.msra.mxu0 0.0
        %1509 = vmatpush.msra.mxu0 0.0
        %1510 = vmatpush.msra.mxu0 0.0
        %1511 = vmatpush.msra.mxu0 0.0
        %1512 = vmatpush.msra.mxu0 0.0
        %1513 = vmatpush.msra.mxu0 0.0
        %1514 = vmatpush.msra.mxu0 0.0
        %1515 = vmatpush.msra.mxu0 0.0
        %1516 = vmatpush.msra.mxu0 0.0
        %1517 = vmatpush.msra.mxu0 0.0
        %1518 = vmatpush.msra.mxu0 0.0
        %v1519 = vand.u32 %v1500, 4294901760
        %1520 = vmatpush.msra.mxu0 %v1519
        %v1521 = vand.u32 %v1490, 4294901760
        %1522 = vmatpush.msra.mxu0 %v1521
        %v1523 = vand.u32 %v1487, 4294901760
        %1524 = vmatpush.msra.mxu0 %v1523
        %v1525 = vand.u32 %v1484, 4294901760
        %1526 = vmatpush.msra.mxu0 %v1525
        %v1527 = vand.u32 %v1481, 4294901760
        %1528 = vmatpush.msra.mxu0 %v1527
        %v1529 = vand.u32 %v1497, 4294901760
        %v1530 = vsub.f32 %v1497, %v1529
        %v1531 = vand.u32 %v1530, 4294901760
        %v1532 = vsub.f32 %v1530, %v1531
        %v1533 = vand.u32 %v1532, 4294901760
        %1534 = vmatmul.f32.gmra.mxu0 %v1533
        %v1535 = vpop.f32.mrf.mxu0
        %v1536 = vadd.f32 0.0, %v1535
        %1537 = vdwg.mxu0
        %1538 = vmatpush.msra.mxu0 0.0
        %1539 = vmatpush.msra.mxu0 0.0
        %1540 = vmatpush.msra.mxu0 0.0
        %1541 = vmatpush.msra.mxu0 0.0
        %1542 = vmatpush.msra.mxu0 0.0
        %1543 = vmatpush.msra.mxu0 0.0
        %1544 = vmatpush.msra.mxu0 0.0
        %1545 = vmatpush.msra.mxu0 0.0
        %1546 = vmatpush.msra.mxu0 0.0
        %1547 = vmatpush.msra.mxu0 0.0
        %1548 = vmatpush.msra.mxu0 0.0
        %v1549 = vand.u32 %v1500, 4294901760
        %v1550 = vsub.f32 %v1500, %v1549
        %v1551 = vand.u32 %v1550, 4294901760
        %v1552 = vsub.f32 %v1550, %v1551
        %v1553 = vand.u32 %v1552, 4294901760
        %1554 = vmatpush.msra.mxu0 %v1553
        %v1555 = vand.u32 %v1490, 4294901760
        %v1556 = vsub.f32 %v1490, %v1555
        %v1557 = vand.u32 %v1556, 4294901760
        %v1558 = vsub.f32 %v1556, %v1557
        %v1559 = vand.u32 %v1558, 4294901760
        %1560 = vmatpush.msra.mxu0 %v1559
        %v1561 = vand.u32 %v1487, 4294901760
        %v1562 = vsub.f32 %v1487, %v1561
        %v1563 = vand.u32 %v1562, 4294901760
        %v1564 = vsub.f32 %v1562, %v1563
        %v1565 = vand.u32 %v1564, 4294901760
        %1566 = vmatpush.msra.mxu0 %v1565
        %v1567 = vand.u32 %v1484, 4294901760
        %v1568 = vsub.f32 %v1484, %v1567
        %v1569 = vand.u32 %v1568, 4294901760
        %v1570 = vsub.f32 %v1568, %v1569
        %v1571 = vand.u32 %v1570, 4294901760
        %1572 = vmatpush.msra.mxu0 %v1571
        %v1573 = vand.u32 %v1481, 4294901760
        %v1574 = vsub.f32 %v1481, %v1573
        %v1575 = vand.u32 %v1574, 4294901760
        %v1576 = vsub.f32 %v1574, %v1575
        %v1577 = vand.u32 %v1576, 4294901760
        %1578 = vmatpush.msra.mxu0 %v1577
        %v1579 = vand.u32 %v1497, 4294901760
        %1580 = vmatmul.f32.gmra.mxu0 %v1579
        %v1581 = vpop.f32.mrf.mxu0
        %v1582 = vadd.f32 %v1536, %v1581
        %1583 = vdwg.mxu0
        %1584 = vmatpush.msra.mxu0 0.0
        %1585 = vmatpush.msra.mxu0 0.0
        %1586 = vmatpush.msra.mxu0 0.0
        %1587 = vmatpush.msra.mxu0 0.0
        %1588 = vmatpush.msra.mxu0 0.0
        %1589 = vmatpush.msra.mxu0 0.0
        %1590 = vmatpush.msra.mxu0 0.0
        %1591 = vmatpush.msra.mxu0 0.0
        %1592 = vmatpush.msra.mxu0 0.0
        %1593 = vmatpush.msra.mxu0 0.0
        %1594 = vmatpush.msra.mxu0 0.0
        %v1595 = vand.u32 %v1500, 4294901760
        %v1596 = vsub.f32 %v1500, %v1595
        %1597 = vmatpush.msra.mxu0 %v1596
        %v1598 = vand.u32 %v1490, 4294901760
        %v1599 = vsub.f32 %v1490, %v1598
        %1600 = vmatpush.msra.mxu0 %v1599
        %v1601 = vand.u32 %v1487, 4294901760
        %v1602 = vsub.f32 %v1487, %v1601
        %1603 = vmatpush.msra.mxu0 %v1602
        %v1604 = vand.u32 %v1484, 4294901760
        %v1605 = vsub.f32 %v1484, %v1604
        %1606 = vmatpush.msra.mxu0 %v1605
        %v1607 = vand.u32 %v1481, 4294901760
        %v1608 = vsub.f32 %v1481, %v1607
        %1609 = vmatpush.msra.mxu0 %v1608
        %v1610 = vand.u32 %v1497, 4294901760
        %v1611 = vsub.f32 %v1497, %v1610
        %1612 = vmatmul.f32.gmra.mxu0 %v1611
        %v1613 = vpop.f32.mrf.mxu0
        %v1614 = vadd.f32 %v1582, %v1613
        %1615 = vdwg.mxu0
        %1616 = vmatpush.msra.mxu0 0.0
        %1617 = vmatpush.msra.mxu0 0.0
        %1618 = vmatpush.msra.mxu0 0.0
        %1619 = vmatpush.msra.mxu0 0.0
        %1620 = vmatpush.msra.mxu0 0.0
        %1621 = vmatpush.msra.mxu0 0.0
        %1622 = vmatpush.msra.mxu0 0.0
        %1623 = vmatpush.msra.mxu0 0.0
        %1624 = vmatpush.msra.mxu0 0.0
        %1625 = vmatpush.msra.mxu0 0.0
        %1626 = vmatpush.msra.mxu0 0.0
        %v1627 = vand.u32 %v1500, 4294901760
        %1628 = vmatpush.msra.mxu0 %v1627
        %v1629 = vand.u32 %v1490, 4294901760
        %1630 = vmatpush.msra.mxu0 %v1629
        %v1631 = vand.u32 %v1487, 4294901760
        %1632 = vmatpush.msra.mxu0 %v1631
        %v1633 = vand.u32 %v1484, 4294901760
        %1634 = vmatpush.msra.mxu0 %v1633
        %v1635 = vand.u32 %v1481, 4294901760
        %1636 = vmatpush.msra.mxu0 %v1635
        %v1637 = vand.u32 %v1497, 4294901760
        %v1638 = vsub.f32 %v1497, %v1637
        %v1639 = vand.u32 %v1638, 4294901760
        %1640 = vmatmul.f32.gmra.mxu0 %v1639
        %v1641 = vpop.f32.mrf.mxu0
        %v1642 = vadd.f32 %v1614, %v1641
        %1643 = vdwg.mxu0
        %1644 = vmatpush.msra.mxu0 0.0
        %1645 = vmatpush.msra.mxu0 0.0
        %1646 = vmatpush.msra.mxu0 0.0
        %1647 = vmatpush.msra.mxu0 0.0
        %1648 = vmatpush.msra.mxu0 0.0
        %1649 = vmatpush.msra.mxu0 0.0
        %1650 = vmatpush.msra.mxu0 0.0
        %1651 = vmatpush.msra.mxu0 0.0
        %1652 = vmatpush.msra.mxu0 0.0
        %1653 = vmatpush.msra.mxu0 0.0
        %1654 = vmatpush.msra.mxu0 0.0
        %v1655 = vand.u32 %v1500, 4294901760
        %v1656 = vsub.f32 %v1500, %v1655
        %v1657 = vand.u32 %v1656, 4294901760
        %1658 = vmatpush.msra.mxu0 %v1657
        %v1659 = vand.u32 %v1490, 4294901760
        %v1660 = vsub.f32 %v1490, %v1659
        %v1661 = vand.u32 %v1660, 4294901760
        %1662 = vmatpush.msra.mxu0 %v1661
        %v1663 = vand.u32 %v1487, 4294901760
        %v1664 = vsub.f32 %v1487, %v1663
        %v1665 = vand.u32 %v1664, 4294901760
        %1666 = vmatpush.msra.mxu0 %v1665
        %v1667 = vand.u32 %v1484, 4294901760
        %v1668 = vsub.f32 %v1484, %v1667
        %v1669 = vand.u32 %v1668, 4294901760
        %1670 = vmatpush.msra.mxu0 %v1669
        %v1671 = vand.u32 %v1481, 4294901760
        %v1672 = vsub.f32 %v1481, %v1671
        %v1673 = vand.u32 %v1672, 4294901760
        %1674 = vmatpush.msra.mxu0 %v1673
        %v1675 = vand.u32 %v1497, 4294901760
        %1676 = vmatmul.f32.gmra.mxu0 %v1675
        %v1677 = vpop.f32.mrf.mxu0
        %v1678 = vadd.f32 %v1642, %v1677
        %1679 = vdwg.mxu0
        %1680 = vmatpush.msra.mxu0 0.0
        %1681 = vmatpush.msra.mxu0 0.0
        %1682 = vmatpush.msra.mxu0 0.0
        %1683 = vmatpush.msra.mxu0 0.0
        %1684 = vmatpush.msra.mxu0 0.0
        %1685 = vmatpush.msra.mxu0 0.0
        %1686 = vmatpush.msra.mxu0 0.0
        %1687 = vmatpush.msra.mxu0 0.0
        %1688 = vmatpush.msra.mxu0 0.0
        %1689 = vmatpush.msra.mxu0 0.0
        %1690 = vmatpush.msra.mxu0 0.0
        %v1691 = vand.u32 %v1500, 4294901760
        %1692 = vmatpush.msra.mxu0 %v1691
        %v1693 = vand.u32 %v1490, 4294901760
        %1694 = vmatpush.msra.mxu0 %v1693
        %v1695 = vand.u32 %v1487, 4294901760
        %1696 = vmatpush.msra.mxu0 %v1695
        %v1697 = vand.u32 %v1484, 4294901760
        %1698 = vmatpush.msra.mxu0 %v1697
        %v1699 = vand.u32 %v1481, 4294901760
        %1700 = vmatpush.msra.mxu0 %v1699
        %v1701 = vand.u32 %v1497, 4294901760
        %1702 = vmatmul.f32.gmra.mxu0 %v1701
        %v1703 = vpop.f32.mrf.mxu0
        %v1704 = vadd.f32 %v1678, %v1703
        %1705 = vdwg.mxu0
        %1706 = vmatpush.msra.mxu0 0.0
        %1707 = vmatpush.msra.mxu0 0.0
        %1708 = vmatpush.msra.mxu0 0.0
        %1709 = vmatpush.msra.mxu0 0.0
        %1710 = vmatpush.msra.mxu0 0.0
        %1711 = vmatpush.msra.mxu0 0.0
        %1712 = vmatpush.msra.mxu0 0.0
        %1713 = vmatpush.msra.mxu0 0.0
        %1714 = vmatpush.msra.mxu0 0.0
        %1715 = vmatpush.msra.mxu0 0.0
        %1716 = vmatpush.msra.mxu0 0.0
        %v1717 = vand.u32 %v1503, 4294901760
        %1718 = vmatpush.msra.mxu0 %v1717
        %v1719 = vand.u32 %v1491, 4294901760
        %1720 = vmatpush.msra.mxu0 %v1719
        %v1721 = vand.u32 %v1488, 4294901760
        %1722 = vmatpush.msra.mxu0 %v1721
        %v1723 = vand.u32 %v1485, 4294901760
        %1724 = vmatpush.msra.mxu0 %v1723
        %v1725 = vand.u32 %v1482, 4294901760
        %1726 = vmatpush.msra.mxu0 %v1725
        %v1727 = vand.u32 %v1497, 4294901760
        %v1728 = vsub.f32 %v1497, %v1727
        %v1729 = vand.u32 %v1728, 4294901760
        %v1730 = vsub.f32 %v1728, %v1729
        %v1731 = vand.u32 %v1730, 4294901760
        %1732 = vmatmul.f32.gmra.mxu0 %v1731
        %v1733 = vpop.f32.mrf.mxu0
        %v1734 = vadd.f32 0.0, %v1733
        %1735 = vdwg.mxu0
        %1736 = vmatpush.msra.mxu0 0.0
        %1737 = vmatpush.msra.mxu0 0.0
        %1738 = vmatpush.msra.mxu0 0.0
        %1739 = vmatpush.msra.mxu0 0.0
        %1740 = vmatpush.msra.mxu0 0.0
        %1741 = vmatpush.msra.mxu0 0.0
        %1742 = vmatpush.msra.mxu0 0.0
        %1743 = vmatpush.msra.mxu0 0.0
        %1744 = vmatpush.msra.mxu0 0.0
        %1745 = vmatpush.msra.mxu0 0.0
        %1746 = vmatpush.msra.mxu0 0.0
        %v1747 = vand.u32 %v1503, 4294901760
        %v1748 = vsub.f32 %v1503, %v1747
        %v1749 = vand.u32 %v1748, 4294901760
        %v1750 = vsub.f32 %v1748, %v1749
        %v1751 = vand.u32 %v1750, 4294901760
        %1752 = vmatpush.msra.mxu0 %v1751
        %v1753 = vand.u32 %v1491, 4294901760
        %v1754 = vsub.f32 %v1491, %v1753
        %v1755 = vand.u32 %v1754, 4294901760
        %v1756 = vsub.f32 %v1754, %v1755
        %v1757 = vand.u32 %v1756, 4294901760
        %1758 = vmatpush.msra.mxu0 %v1757
        %v1759 = vand.u32 %v1488, 4294901760
        %v1760 = vsub.f32 %v1488, %v1759
        %v1761 = vand.u32 %v1760, 4294901760
        %v1762 = vsub.f32 %v1760, %v1761
        %v1763 = vand.u32 %v1762, 4294901760
        %1764 = vmatpush.msra.mxu0 %v1763
        %v1765 = vand.u32 %v1485, 4294901760
        %v1766 = vsub.f32 %v1485, %v1765
        %v1767 = vand.u32 %v1766, 4294901760
        %v1768 = vsub.f32 %v1766, %v1767
        %v1769 = vand.u32 %v1768, 4294901760
        %1770 = vmatpush.msra.mxu0 %v1769
        %v1771 = vand.u32 %v1482, 4294901760
        %v1772 = vsub.f32 %v1482, %v1771
        %v1773 = vand.u32 %v1772, 4294901760
        %v1774 = vsub.f32 %v1772, %v1773
        %v1775 = vand.u32 %v1774, 4294901760
        %1776 = vmatpush.msra.mxu0 %v1775
        %v1777 = vand.u32 %v1497, 4294901760
        %1778 = vmatmul.f32.gmra.mxu0 %v1777
        %v1779 = vpop.f32.mrf.mxu0
        %v1780 = vadd.f32 %v1734, %v1779
        %1781 = vdwg.mxu0
        %1782 = vmatpush.msra.mxu0 0.0
        %1783 = vmatpush.msra.mxu0 0.0
        %1784 = vmatpush.msra.mxu0 0.0
        %1785 = vmatpush.msra.mxu0 0.0
        %1786 = vmatpush.msra.mxu0 0.0
        %1787 = vmatpush.msra.mxu0 0.0
        %1788 = vmatpush.msra.mxu0 0.0
        %1789 = vmatpush.msra.mxu0 0.0
        %1790 = vmatpush.msra.mxu0 0.0
        %1791 = vmatpush.msra.mxu0 0.0
        %1792 = vmatpush.msra.mxu0 0.0
        %v1793 = vand.u32 %v1503, 4294901760
        %v1794 = vsub.f32 %v1503, %v1793
        %1795 = vmatpush.msra.mxu0 %v1794
        %v1796 = vand.u32 %v1491, 4294901760
        %v1797 = vsub.f32 %v1491, %v1796
        %1798 = vmatpush.msra.mxu0 %v1797
        %v1799 = vand.u32 %v1488, 4294901760
        %v1800 = vsub.f32 %v1488, %v1799
        %1801 = vmatpush.msra.mxu0 %v1800
        %v1802 = vand.u32 %v1485, 4294901760
        %v1803 = vsub.f32 %v1485, %v1802
        %1804 = vmatpush.msra.mxu0 %v1803
        %v1805 = vand.u32 %v1482, 4294901760
        %v1806 = vsub.f32 %v1482, %v1805
        %1807 = vmatpush.msra.mxu0 %v1806
        %v1808 = vand.u32 %v1497, 4294901760
        %v1809 = vsub.f32 %v1497, %v1808
        %1810 = vmatmul.f32.gmra.mxu0 %v1809
        %v1811 = vpop.f32.mrf.mxu0
        %v1812 = vadd.f32 %v1780, %v1811
        %1813 = vdwg.mxu0
        %1814 = vmatpush.msra.mxu0 0.0
        %1815 = vmatpush.msra.mxu0 0.0
        %1816 = vmatpush.msra.mxu0 0.0
        %1817 = vmatpush.msra.mxu0 0.0
        %1818 = vmatpush.msra.mxu0 0.0
        %1819 = vmatpush.msra.mxu0 0.0
        %1820 = vmatpush.msra.mxu0 0.0
        %1821 = vmatpush.msra.mxu0 0.0
        %1822 = vmatpush.msra.mxu0 0.0
        %1823 = vmatpush.msra.mxu0 0.0
        %1824 = vmatpush.msra.mxu0 0.0
        %v1825 = vand.u32 %v1503, 4294901760
        %1826 = vmatpush.msra.mxu0 %v1825
        %v1827 = vand.u32 %v1491, 4294901760
        %1828 = vmatpush.msra.mxu0 %v1827
        %v1829 = vand.u32 %v1488, 4294901760
        %1830 = vmatpush.msra.mxu0 %v1829
        %v1831 = vand.u32 %v1485, 4294901760
        %1832 = vmatpush.msra.mxu0 %v1831
        %v1833 = vand.u32 %v1482, 4294901760
        %1834 = vmatpush.msra.mxu0 %v1833
        %v1835 = vand.u32 %v1497, 4294901760
        %v1836 = vsub.f32 %v1497, %v1835
        %v1837 = vand.u32 %v1836, 4294901760
        %1838 = vmatmul.f32.gmra.mxu0 %v1837
        %v1839 = vpop.f32.mrf.mxu0
        %v1840 = vadd.f32 %v1812, %v1839
        %1841 = vdwg.mxu0
        %1842 = vmatpush.msra.mxu0 0.0
        %1843 = vmatpush.msra.mxu0 0.0
        %1844 = vmatpush.msra.mxu0 0.0
        %1845 = vmatpush.msra.mxu0 0.0
        %1846 = vmatpush.msra.mxu0 0.0
        %1847 = vmatpush.msra.mxu0 0.0
        %1848 = vmatpush.msra.mxu0 0.0
        %1849 = vmatpush.msra.mxu0 0.0
        %1850 = vmatpush.msra.mxu0 0.0
        %1851 = vmatpush.msra.mxu0 0.0
        %1852 = vmatpush.msra.mxu0 0.0
        %v1853 = vand.u32 %v1503, 4294901760
        %v1854 = vsub.f32 %v1503, %v1853
        %v1855 = vand.u32 %v1854, 4294901760
        %1856 = vmatpush.msra.mxu0 %v1855
        %v1857 = vand.u32 %v1491, 4294901760
        %v1858 = vsub.f32 %v1491, %v1857
        %v1859 = vand.u32 %v1858, 4294901760
        %1860 = vmatpush.msra.mxu0 %v1859
        %v1861 = vand.u32 %v1488, 4294901760
        %v1862 = vsub.f32 %v1488, %v1861
        %v1863 = vand.u32 %v1862, 4294901760
        %1864 = vmatpush.msra.mxu0 %v1863
        %v1865 = vand.u32 %v1485, 4294901760
        %v1866 = vsub.f32 %v1485, %v1865
        %v1867 = vand.u32 %v1866, 4294901760
        %1868 = vmatpush.msra.mxu0 %v1867
        %v1869 = vand.u32 %v1482, 4294901760
        %v1870 = vsub.f32 %v1482, %v1869
        %v1871 = vand.u32 %v1870, 4294901760
        %1872 = vmatpush.msra.mxu0 %v1871
        %v1873 = vand.u32 %v1497, 4294901760
        %1874 = vmatmul.f32.gmra.mxu0 %v1873
        %v1875 = vpop.f32.mrf.mxu0
        %v1876 = vadd.f32 %v1840, %v1875
        %1877 = vdwg.mxu0
        %1878 = vmatpush.msra.mxu0 0.0
        %1879 = vmatpush.msra.mxu0 0.0
        %1880 = vmatpush.msra.mxu0 0.0
        %1881 = vmatpush.msra.mxu0 0.0
        %1882 = vmatpush.msra.mxu0 0.0
        %1883 = vmatpush.msra.mxu0 0.0
        %1884 = vmatpush.msra.mxu0 0.0
        %1885 = vmatpush.msra.mxu0 0.0
        %1886 = vmatpush.msra.mxu0 0.0
        %1887 = vmatpush.msra.mxu0 0.0
        %1888 = vmatpush.msra.mxu0 0.0
        %v1889 = vand.u32 %v1503, 4294901760
        %1890 = vmatpush.msra.mxu0 %v1889
        %v1891 = vand.u32 %v1491, 4294901760
        %1892 = vmatpush.msra.mxu0 %v1891
        %v1893 = vand.u32 %v1488, 4294901760
        %1894 = vmatpush.msra.mxu0 %v1893
        %v1895 = vand.u32 %v1485, 4294901760
        %1896 = vmatpush.msra.mxu0 %v1895
        %v1897 = vand.u32 %v1482, 4294901760
        %1898 = vmatpush.msra.mxu0 %v1897
        %v1899 = vand.u32 %v1497, 4294901760
        %1900 = vmatmul.f32.gmra.mxu0 %v1899
        %v1901 = vpop.f32.mrf.mxu0
        %v1902 = vadd.f32 %v1876, %v1901
        %1903 = vdwg.mxu0
        %1904 = vmatpush.msra.mxu0 0.0
        %1905 = vmatpush.msra.mxu0 0.0
        %1906 = vmatpush.msra.mxu0 0.0
        %1907 = vmatpush.msra.mxu0 0.0
        %1908 = vmatpush.msra.mxu0 0.0
        %1909 = vmatpush.msra.mxu0 0.0
        %1910 = vmatpush.msra.mxu0 0.0
        %1911 = vmatpush.msra.mxu0 0.0
        %1912 = vmatpush.msra.mxu0 0.0
        %1913 = vmatpush.msra.mxu0 0.0
        %1914 = vmatpush.msra.mxu0 0.0
        %v1915 = vand.u32 %v1506, 4294901760
        %1916 = vmatpush.msra.mxu0 %v1915
        %v1917 = vand.u32 %v1492, 4294901760
        %1918 = vmatpush.msra.mxu0 %v1917
        %v1919 = vand.u32 %v1489, 4294901760
        %1920 = vmatpush.msra.mxu0 %v1919
        %v1921 = vand.u32 %v1486, 4294901760
        %1922 = vmatpush.msra.mxu0 %v1921
        %v1923 = vand.u32 %v1483, 4294901760
        %1924 = vmatpush.msra.mxu0 %v1923
        %v1925 = vand.u32 %v1497, 4294901760
        %v1926 = vsub.f32 %v1497, %v1925
        %v1927 = vand.u32 %v1926, 4294901760
        %v1928 = vsub.f32 %v1926, %v1927
        %v1929 = vand.u32 %v1928, 4294901760
        %1930 = vmatmul.f32.gmra.mxu0 %v1929
        %v1931 = vpop.f32.mrf.mxu0
        %v1932 = vadd.f32 0.0, %v1931
        %1933 = vdwg.mxu0
        %1934 = vmatpush.msra.mxu0 0.0
        %1935 = vmatpush.msra.mxu0 0.0
        %1936 = vmatpush.msra.mxu0 0.0
        %1937 = vmatpush.msra.mxu0 0.0
        %1938 = vmatpush.msra.mxu0 0.0
        %1939 = vmatpush.msra.mxu0 0.0
        %1940 = vmatpush.msra.mxu0 0.0
        %1941 = vmatpush.msra.mxu0 0.0
        %1942 = vmatpush.msra.mxu0 0.0
        %1943 = vmatpush.msra.mxu0 0.0
        %1944 = vmatpush.msra.mxu0 0.0
        %v1945 = vand.u32 %v1506, 4294901760
        %v1946 = vsub.f32 %v1506, %v1945
        %v1947 = vand.u32 %v1946, 4294901760
        %v1948 = vsub.f32 %v1946, %v1947
        %v1949 = vand.u32 %v1948, 4294901760
        %1950 = vmatpush.msra.mxu0 %v1949
        %v1951 = vand.u32 %v1492, 4294901760
        %v1952 = vsub.f32 %v1492, %v1951
        %v1953 = vand.u32 %v1952, 4294901760
        %v1954 = vsub.f32 %v1952, %v1953
        %v1955 = vand.u32 %v1954, 4294901760
        %1956 = vmatpush.msra.mxu0 %v1955
        %v1957 = vand.u32 %v1489, 4294901760
        %v1958 = vsub.f32 %v1489, %v1957
        %v1959 = vand.u32 %v1958, 4294901760
        %v1960 = vsub.f32 %v1958, %v1959
        %v1961 = vand.u32 %v1960, 4294901760
        %1962 = vmatpush.msra.mxu0 %v1961
        %v1963 = vand.u32 %v1486, 4294901760
        %v1964 = vsub.f32 %v1486, %v1963
        %v1965 = vand.u32 %v1964, 4294901760
        %v1966 = vsub.f32 %v1964, %v1965
        %v1967 = vand.u32 %v1966, 4294901760
        %1968 = vmatpush.msra.mxu0 %v1967
        %v1969 = vand.u32 %v1483, 4294901760
        %v1970 = vsub.f32 %v1483, %v1969
        %v1971 = vand.u32 %v1970, 4294901760
        %v1972 = vsub.f32 %v1970, %v1971
        %v1973 = vand.u32 %v1972, 4294901760
        %1974 = vmatpush.msra.mxu0 %v1973
        %v1975 = vand.u32 %v1497, 4294901760
        %1976 = vmatmul.f32.gmra.mxu0 %v1975
        %v1977 = vpop.f32.mrf.mxu0
        %v1978 = vadd.f32 %v1932, %v1977
        %1979 = vdwg.mxu0
        %1980 = vmatpush.msra.mxu0 0.0
        %1981 = vmatpush.msra.mxu0 0.0
        %1982 = vmatpush.msra.mxu0 0.0
        %1983 = vmatpush.msra.mxu0 0.0
        %1984 = vmatpush.msra.mxu0 0.0
        %1985 = vmatpush.msra.mxu0 0.0
        %1986 = vmatpush.msra.mxu0 0.0
        %1987 = vmatpush.msra.mxu0 0.0
        %1988 = vmatpush.msra.mxu0 0.0
        %1989 = vmatpush.msra.mxu0 0.0
        %1990 = vmatpush.msra.mxu0 0.0
        %v1991 = vand.u32 %v1506, 4294901760
        %v1992 = vsub.f32 %v1506, %v1991
        %1993 = vmatpush.msra.mxu0 %v1992
        %v1994 = vand.u32 %v1492, 4294901760
        %v1995 = vsub.f32 %v1492, %v1994
        %1996 = vmatpush.msra.mxu0 %v1995
        %v1997 = vand.u32 %v1489, 4294901760
        %v1998 = vsub.f32 %v1489, %v1997
        %1999 = vmatpush.msra.mxu0 %v1998
        %v2000 = vand.u32 %v1486, 4294901760
        %v2001 = vsub.f32 %v1486, %v2000
        %2002 = vmatpush.msra.mxu0 %v2001
        %v2003 = vand.u32 %v1483, 4294901760
        %v2004 = vsub.f32 %v1483, %v2003
        %2005 = vmatpush.msra.mxu0 %v2004
        %v2006 = vand.u32 %v1497, 4294901760
        %v2007 = vsub.f32 %v1497, %v2006
        %2008 = vmatmul.f32.gmra.mxu0 %v2007
        %v2009 = vpop.f32.mrf.mxu0
        %v2010 = vadd.f32 %v1978, %v2009
        %2011 = vdwg.mxu0
        %2012 = vmatpush.msra.mxu0 0.0
        %2013 = vmatpush.msra.mxu0 0.0
        %2014 = vmatpush.msra.mxu0 0.0
        %2015 = vmatpush.msra.mxu0 0.0
        %2016 = vmatpush.msra.mxu0 0.0
        %2017 = vmatpush.msra.mxu0 0.0
        %2018 = vmatpush.msra.mxu0 0.0
        %2019 = vmatpush.msra.mxu0 0.0
        %2020 = vmatpush.msra.mxu0 0.0
        %2021 = vmatpush.msra.mxu0 0.0
        %2022 = vmatpush.msra.mxu0 0.0
        %v2023 = vand.u32 %v1506, 4294901760
        %2024 = vmatpush.msra.mxu0 %v2023
        %v2025 = vand.u32 %v1492, 4294901760
        %2026 = vmatpush.msra.mxu0 %v2025
        %v2027 = vand.u32 %v1489, 4294901760
        %2028 = vmatpush.msra.mxu0 %v2027
        %v2029 = vand.u32 %v1486, 4294901760
        %2030 = vmatpush.msra.mxu0 %v2029
        %v2031 = vand.u32 %v1483, 4294901760
        %2032 = vmatpush.msra.mxu0 %v2031
        %v2033 = vand.u32 %v1497, 4294901760
        %v2034 = vsub.f32 %v1497, %v2033
        %v2035 = vand.u32 %v2034, 4294901760
        %2036 = vmatmul.f32.gmra.mxu0 %v2035
        %v2037 = vpop.f32.mrf.mxu0
        %v2038 = vadd.f32 %v2010, %v2037
        %2039 = vdwg.mxu0
        %2040 = vmatpush.msra.mxu0 0.0
        %2041 = vmatpush.msra.mxu0 0.0
        %2042 = vmatpush.msra.mxu0 0.0
        %2043 = vmatpush.msra.mxu0 0.0
        %2044 = vmatpush.msra.mxu0 0.0
        %2045 = vmatpush.msra.mxu0 0.0
        %2046 = vmatpush.msra.mxu0 0.0
        %2047 = vmatpush.msra.mxu0 0.0
        %2048 = vmatpush.msra.mxu0 0.0
        %2049 = vmatpush.msra.mxu0 0.0
        %2050 = vmatpush.msra.mxu0 0.0
        %v2051 = vand.u32 %v1506, 4294901760
        %v2052 = vsub.f32 %v1506, %v2051
        %v2053 = vand.u32 %v2052, 4294901760
        %2054 = vmatpush.msra.mxu0 %v2053
        %v2055 = vand.u32 %v1492, 4294901760
        %v2056 = vsub.f32 %v1492, %v2055
        %v2057 = vand.u32 %v2056, 4294901760
        %2058 = vmatpush.msra.mxu0 %v2057
        %v2059 = vand.u32 %v1489, 4294901760
        %v2060 = vsub.f32 %v1489, %v2059
        %v2061 = vand.u32 %v2060, 4294901760
        %2062 = vmatpush.msra.mxu0 %v2061
        %v2063 = vand.u32 %v1486, 4294901760
        %v2064 = vsub.f32 %v1486, %v2063
        %v2065 = vand.u32 %v2064, 4294901760
        %2066 = vmatpush.msra.mxu0 %v2065
        %v2067 = vand.u32 %v1483, 4294901760
        %v2068 = vsub.f32 %v1483, %v2067
        %v2069 = vand.u32 %v2068, 4294901760
        %2070 = vmatpush.msra.mxu0 %v2069
        %v2071 = vand.u32 %v1497, 4294901760
        %2072 = vmatmul.f32.gmra.mxu0 %v2071
        %v2073 = vpop.f32.mrf.mxu0
        %v2074 = vadd.f32 %v2038, %v2073
        %2075 = vdwg.mxu0
        %2076 = vmatpush.msra.mxu0 0.0
        %2077 = vmatpush.msra.mxu0 0.0
        %2078 = vmatpush.msra.mxu0 0.0
        %2079 = vmatpush.msra.mxu0 0.0
        %2080 = vmatpush.msra.mxu0 0.0
        %2081 = vmatpush.msra.mxu0 0.0
        %2082 = vmatpush.msra.mxu0 0.0
        %2083 = vmatpush.msra.mxu0 0.0
        %2084 = vmatpush.msra.mxu0 0.0
        %2085 = vmatpush.msra.mxu0 0.0
        %2086 = vmatpush.msra.mxu0 0.0
        %v2087 = vand.u32 %v1506, 4294901760
        %2088 = vmatpush.msra.mxu0 %v2087
        %v2089 = vand.u32 %v1492, 4294901760
        %2090 = vmatpush.msra.mxu0 %v2089
        %v2091 = vand.u32 %v1489, 4294901760
        %2092 = vmatpush.msra.mxu0 %v2091
        %v2093 = vand.u32 %v1486, 4294901760
        %2094 = vmatpush.msra.mxu0 %v2093
        %v2095 = vand.u32 %v1483, 4294901760
        %2096 = vmatpush.msra.mxu0 %v2095
        %v2097 = vand.u32 %v1497, 4294901760
        %2098 = vmatmul.f32.gmra.mxu0 %v2097
        %v2099 = vpop.f32.mrf.mxu0
        %v2100 = vadd.f32 %v2074, %v2099
        %2101 = vdwg.mxu0
        %v2102 = vsel %vm1082, %v1704, 0.0
        %v2103 = vsel %vm1083, %v1902, 0.0
        %v2104 = vsel %vm1084, %v2100, 0.0
        %v2105 = vsel %vm474, %v2102, 0.0
        %v2106 = vsel %vm474, %v2103, 0.0
        %v2107 = vadd.f32 %v2105, %v2106
        %v2108 = vsel %vm280, %v2104, 0.0
        %v2109 = vadd.f32 %v2107, %v2108
        %2110 = vadd.xlane.f32.xlu0 %v2109
        %v2111 = vpop.xlane.xlu0 %2110
        %v2112 = vmul.f32 %v2102, %v2102
        %v2113 = vmul.f32 %v2103, %v2103
        %v2114 = vmul.f32 %v2104, %v2104
        %v2115 = vsel %vm474, %v2112, 0.0
        %v2116 = vsel %vm474, %v2113, 0.0
        %v2117 = vadd.f32 %v2115, %v2116
        %v2118 = vsel %vm280, %v2114, 0.0
        %v2119 = vadd.f32 %v2117, %v2118
        %2120 = vadd.xlane.f32.xlu0 %v2119
        %v2121 = vpop.xlane.xlu0 %2120
        %v2122 = vmul.f32 %v2111, 0.00390625
        %v2123 = vmul.f32 %v2121, 0.00390625
        %v2124 = vmul.f32 %v2122, %v2122
        %v2125 = vsub.f32 %v2123, %v2124
        %v2126 = vsub.f32 %v1704, %v2122
        %v2127 = vsub.f32 %v1902, %v2122
        %v2128 = vsub.f32 %v2100, %v2122
        %v2129 = vadd.f32 %v2125, 1e-05
        %v2130 = vrsqrt.pop %v2129
        %v2131 = vmul.f32 %v2130, %v2129
        %v2132 = vmul.f32 %v2131, %v2130
        %v2133 = vmul.f32 0.5, %v2132
        %v2134 = vsub.f32 1.5, %v2133
        %v2135 = vmul.f32 %v2130, %v2134
        %vm2136 = vweird.f32 %v2129
        %vm2137 = vweird.f32 %v2130
        %vm2138 = vmor %vm2136, %vm2137
        %v2139 = vsel %vm2138, %v2130, %v2135
        %v2140 = vmul.f32 %v2126, %v2139
        %v2141 = vmul.f32 %v2127, %v2139
        %v2142 = vmul.f32 %v2128, %v2139
        %v2146 = vrot.slane %v2141, 4
        %v2147 = vsel %vm474, %v2140, %v2146
        %2148 = vrot.lane.b32.xlu0 %v2147, 19
        %v2149 = vpop.permute.xlu0 %2148
        %2150 = vrot.lane.b32.xlu0 %v2142, 19
        %v2151 = vpop.permute.xlu0 %2150
        %v2152 = vrot.slane %v2149, 4
        %vm2153 = vcmask 154624
        %v2154 = vsel %vm2153, %v2152, %v2149
        %v2155 = vsel %vm2153, %v2152, %v2151
        %v2158 = vadd.f32 %v264, %v2154
        %v2159 = vadd.f32 %v265, %v2155
        %2162 = vrot.lane.b32.xlu0 %v2158, 109
        %v2163 = vpop.permute.xlu0 %2162
        %2164 = vrot.lane.b32.xlu0 %v2159, 109
        %v2165 = vpop.permute.xlu0 %2164
        %v2166 = vrot.slane %v2163, 4
        %v2167 = vrot.slane %v2165, 4
        %v2168 = vsel %vm474, %v2166, %v2167
        %v2169 = vsel %vm360, %v2163, %v2168
        %2172 = vst [vmem:[%s259] sm:$0xff] %v2169
        %2173 = vst.msk [vmem:[%s259 + $0x8] sm:$0xf] %vm280, %v2165
        %s2174 = sand.u32 %s120, 1
        %s2175 = scalar_lea.sflag [#allocation7], %s2174
        %s2176 = sand.u32 %s120, 1
        %s2177 = smul.addr %s2176, 12
        %s2178 = scalar_lea.vmem [#allocation13], %s2177
        // Predicated region
        $region53: #{tpu_custom_call.1} parent=35 // pred_check
          %p2179 = pneg %p130
        $region54: #{tpu_custom_call.1} parent=35 // pred_check_branch
          %2181 = sbr.rel (%p2179) target = $region56
        $region55: #{tpu_custom_call.1} parent=35 // pred_region
          %2183 = vsyncadd %s2175, 0
          %s2184 = smul.addr %s23, 3
          %s2185 = smul.addr %s2184, 4
          %s2186 = scalar_lea.hbm %s4, %s2185
          %s2188 = sshll.u32 %s2178, 4
          %s2189 = int_to_ptr.vmem [resolvable:$true] %s2188
          %s2190 = sshll.u32 %s2186, 4
          %s2191 = int_to_ptr.hbm [resolvable:$true] %s2190
          %2193 = dma.vmem_to_hbm [thread:$0]  %s2189, 192, %s2191, %s2175
        $region56: #{tpu_custom_call.1} parent=35 // pred_fallthru
          _
      $region36: #{tpu_custom_call.1} parent=5 // pred_fallthru
        _
      %p2194 = scmp.le.s32.totalorder 2, %s18
      // Predicated region
      $region57: #{tpu_custom_call.1} parent=5 // pred_check
        %p2195 = pneg %p2194
      $region58: #{tpu_custom_call.1} parent=5 // pred_check_branch
        %2197 = sbr.rel (%p2195) target = $region60
      $region59: #{tpu_custom_call.1} parent=5 // pred_region
        %s2198 = ssub.s32 %s18, 2
        // Predicated region
        $region61: #{tpu_custom_call.1} parent=59 // pred_check
          %p2199 = pneg %p136
        $region62: #{tpu_custom_call.1} parent=59 // pred_check_branch
          %2201 = sbr.rel (%p2199) target = $region64
        $region63: #{tpu_custom_call.1} parent=59 // pred_region
          %s2202 = sand.u32 %s121, 1
          %s2203 = scalar_lea.sflag [#allocation7], %s2202
          %s2204 = sand.u32 %s121, 1
          %s2205 = smul.addr %s2204, 12
          %s2206 = scalar_lea.vmem [#allocation13], %s2205
          %2208 = dma.done %s2203, 192
        $region64: #{tpu_custom_call.1} parent=59 // pred_fallthru
          _
      $region60: #{tpu_custom_call.1} parent=5 // pred_fallthru
        _
    $region6: #{tpu_custom_call.1} parent=1 // loop_footer
      %s22 = sadd.s32 1, %s18
    $region7: #{tpu_custom_call.1} parent=1 // loop_footer_branch
      %17 = sbr.rel target = $region3
    $region8: #{tpu_custom_call.1} parent=1 // loop_exit
      _
    %2209 = vsyncpa [#allocation6], 1
    %s2210 = scalar_lea.sflag [#allocation6], 1
    %2211 = vsyncpa %s2210, 1
    %2212 = vsyncpa [#allocation9], 1
    %s2213 = scalar_lea.sflag [#allocation9], 1
    %2214 = vsyncpa %s2213, 1
    %2215 = vsyncpa [#allocation12], 1
    %2216 = vsyncpa [#allocation7], 1
    %s2217 = scalar_lea.sflag [#allocation7], 1
    %2218 = vsyncpa %s2217, 1

</llo_original>
